<compile_context>
chip_gen: v5e
topology: v5e:2x2
jax: 0.10.0
libtpu: 0.0.40
codegen_flags: <defaults>
</compile_context>

<pallas_src>
import functools

import jax
import jax.numpy as jnp
from jax.experimental import pallas as pl
from jax.experimental.pallas import tpu as pltpu

EPS = 1e-5  # nn.BatchNorm2d default eps

# --------------------------- device-aware sizing ----------------------------

_VMEM_BUDGET = None


def _vmem_budget():
    """~70% of the chip's VMEM (128 MiB v5e/v6e, 64 MiB v7x); safe fallback."""
    global _VMEM_BUDGET
    if _VMEM_BUDGET is None:
        try:
            cap = int(pltpu.get_tpu_info().vmem_capacity_bytes)
            if cap <= 0:
                raise ValueError("bad vmem capacity")
        except Exception:
            cap = 64 * 1024 * 1024
        _VMEM_BUDGET = int(cap * 0.7)
    return _VMEM_BUDGET


def _cparams(dims=None):
    kw = dict(vmem_limit_bytes=_vmem_budget())
    if dims:
        kw["dimension_semantics"] = tuple(dims)
    return pltpu.CompilerParams(**kw)


def _round_up(x, m):
    return -(-x // m) * m


def _pick_row_tile(R, row_bytes, fixed_bytes):
    """Largest row tile whose double-buffered blocks fit the VMEM budget."""
    avail = max(_vmem_budget() // 2 - 2 * fixed_bytes, 2 * 1024 * 1024)
    cap = avail // (2 * max(row_bytes, 1))        # x2: double buffering
    cap = max(128, min(1024, cap))
    cap = (cap // 8) * 8
    r8 = max(8, _round_up(R, 8))
    return min(r8, cap)


# ------------------------------ Pallas kernels ------------------------------

def _matmul_stats_kernel(x_ref, w_ref, y_ref, ps_ref):
    """Per-group bf16 matmul (MXU) + per-row-tile BN partial statistics.

    x_ref : (G, tr, Kg)  bf16 im2col rows, grouped contraction columns
    w_ref : (G, Kg, CoutPg) bf16
    y_ref : (tr, Cout)   f32 raw conv output rows
    ps_ref: (1, 2, Cout) f32 [sum, sum-of-squares] over this row tile
    """
    G, _, cout_pg = w_ref.shape
    for g in range(G):
        y_g = jnp.dot(x_ref[g], w_ref[g], preferred_element_type=jnp.float32)
        lo, hi = g * cout_pg, (g + 1) * cout_pg
        y_ref[:, lo:hi] = y_g
        ps_ref[0, 0:1, lo:hi] = jnp.sum(y_g, axis=0, keepdims=True)
        ps_ref[0, 1:2, lo:hi] = jnp.sum(y_g * y_g, axis=0, keepdims=True)


def _bn_act_kernel(y_ref, st_ref, g_ref, b_ref, o_ref, *, inv_n, relu):
    """Apply training-mode BN (from global sum/sumsq) + optional ReLU."""
    y = y_ref[...]
    mean = st_ref[0:1, :] * inv_n
    var = st_ref[1:2, :] * inv_n - mean * mean
    scale = g_ref[...] * jax.lax.rsqrt(var + EPS)
    shift = b_ref[...] - mean * scale
    out = y * scale + shift
    if relu:
        out = jnp.maximum(out, 0.0)
    o_ref[...] = out


def _bn_act_res_kernel(y_ref, st_ref, g_ref, b_ref, r_ref, o_ref, *,
                       inv_n, inner_relu):
    """BN apply (+ optional inner ReLU) + residual add + final ReLU, fused."""
    y = y_ref[...]
    mean = st_ref[0:1, :] * inv_n
    var = st_ref[1:2, :] * inv_n - mean * mean
    scale = g_ref[...] * jax.lax.rsqrt(var + EPS)
    shift = b_ref[...] - mean * scale
    out = y * scale + shift
    if inner_relu:
        out = jnp.maximum(out, 0.0)
    o_ref[...] = jnp.maximum(out + r_ref[...], 0.0)


def _pool_kernel(x_ref, o_ref, *, k, Ho, Wo, C, op_max):
    """Stride-2 pooling on an even/odd repacked block.

    x_ref: (1, Hh, 2, Wh, 2*C).  Tap (dh, dw) of a stride-2 window maps to the
    unit-stride slice (dh//2 + o_h, dh%2, dw//2 + o_w, (dw%2)*C : ...), so no
    strided reads and no k*k duplicated copies in HBM are needed.
    """
    acc = None
    for dh in range(k):
        for dw in range(k):
            hh, hp = dh // 2, dh % 2
            wh, wp = dw // 2, dw % 2
            win = x_ref[0, hh:hh + Ho, hp, wh:wh + Wo, wp * C:(wp + 1) * C]
            if acc is None:
                acc = win
            elif op_max:
                acc = jnp.maximum(acc, win)
            else:
                acc = acc + win
    if not op_max:
        acc = acc * (1.0 / float(k * k))
    o_ref[0] = acc


def _linear_kernel(x_ref, w_ref, b_ref, o_ref):
    o_ref[...] = jnp.dot(x_ref[...], w_ref[...],
                         preferred_element_type=jnp.float32) + b_ref[...]


# --------------------------- fused conv + BN (+res) --------------------------

def conv_bn_act(x, w, gamma, beta, *, stride=1, padding=0, groups=1,
                relu=True, residual=None, inner_relu=True):
    """Conv2d (bias-free: cancelled by training-mode BN) + BatchNorm2d with
    batch statistics + optional ReLU, optionally fused with a residual add and
    a final ReLU.

    x: (N, H, W, Cin) f32.  w: (Cout, Cin//groups, kh, kw) (torch layout).
    residual: optional (R, Cout) f32 rows in (n, ho, wo) order; output then is
      relu( [relu]( bn(conv(x)) ) + residual ).
    """
    N, H, W, Cin = x.shape
    Cout, cpg_in, kh, kw = w.shape
    G = groups
    cout_pg = Cout // G
    Ho = (H + 2 * padding - kh) // stride + 1
    Wo = (W + 2 * padding - kw) // stride + 1
    R = N * Ho * Wo
    T = kh * kw
    Kg = T * cpg_in

    xb = x.astype(jnp.bfloat16)
    if kh == 1 and kw == 1 and padding == 0:
        # 1x1 conv: no im2col duplication at all (just an optional stride slice)
        xs = xb if stride == 1 else xb[:, ::stride, ::stride, :]
        patches = xs.reshape(R, 1, Cin)
    else:
        # TODO(synk): replace this im2col materialization (kh*kw HBM duplication)
        # with shifted in-kernel matmuls over the padded activation.
        xp = jnp.pad(xb, ((0, 0), (padding, padding), (padding, padding), (0, 0)))
        taps = [xp[:, dh:dh + (Ho - 1) * stride + 1:stride,
                    dw:dw + (Wo - 1) * stride + 1:stride, :]
                for dh in range(kh) for dw in range(kw)]
        patches = jnp.stack(taps, axis=3).reshape(R, T, Cin)

    # (R, T, G, Cpg) -> (G, R, T*Cpg): grouped, row-major contraction columns.
    Xg = patches.reshape(R, T, G, cpg_in).transpose(2, 0, 1, 3).reshape(G, R, Kg)

    # weights: (Cout, Cpg, kh, kw) -> (G, Kg, CoutPg), column order (tap, cpg).
    Wg = (w.reshape(G, cout_pg, cpg_in, kh, kw)
           .transpose(0, 3, 4, 2, 1)
           .reshape(G, Kg, cout_pg)
           .astype(jnp.bfloat16))

    row_bytes = G * Kg * 2 + 2 * Cout * 4          # X rows (bf16) + y/out rows
    fixed_bytes = 2 * G * Kg * cout_pg * 2         # double-buffered weights
    tr = _pick_row_tile(R, row_bytes, fixed_bytes)
    R_pad = _round_up(R, tr)
    n_rt = R_pad // tr
    if R_pad != R:                                  # zero rows: no effect on BN sums
        Xg = jnp.pad(Xg, ((0, 0), (0, R_pad - R), (0, 0)))

    y, ps = pl.pallas_call(
        _matmul_stats_kernel,
        grid=(n_rt,),
        in_specs=[
            pl.BlockSpec((G, tr, Kg), lambda i: (0, i, 0)),
            pl.BlockSpec((G, Kg, cout_pg), lambda i: (0, 0, 0)),
        ],
        out_specs=(
            pl.BlockSpec((tr, Cout), lambda i: (i, 0)),
            pl.BlockSpec((1, 2, Cout), lambda i: (i, 0, 0)),
        ),
        out_shape=(
            jax.ShapeDtypeStruct((R_pad, Cout), jnp.float32),
            jax.ShapeDtypeStruct((n_rt, 2, Cout), jnp.float32),
        ),
        compiler_params=_cparams(("parallel",)),
    )(Xg, Wg)

    stats = jnp.sum(ps, axis=0)                    # (2, Cout) tiny glue reduction
    g2 = gamma.reshape(1, Cout).astype(jnp.float32)
    b2 = beta.reshape(1, Cout).astype(jnp.float32)
    inv_n = 1.0 / float(R)                         # true (unpadded) N*Ho*Wo

    y_spec = pl.BlockSpec((tr, Cout), lambda i: (i, 0))
    st_spec = pl.BlockSpec((2, Cout), lambda i: (0, 0))
    v_spec = pl.BlockSpec((1, Cout), lambda i: (0, 0))

    if residual is None:
        out = pl.pallas_call(
            functools.partial(_bn_act_kernel, inv_n=inv_n, relu=relu),
            grid=(n_rt,),
            in_specs=[y_spec, st_spec, v_spec, v_spec],
            out_specs=y_spec,
            out_shape=jax.ShapeDtypeStruct((R_pad, Cout), jnp.float32),
            compiler_params=_cparams(("parallel",)),
        )(y, stats, g2, b2)
    else:
        res = residual
        if R_pad != R:
            res = jnp.pad(res, ((0, R_pad - R), (0, 0)))
        out = pl.pallas_call(
            functools.partial(_bn_act_res_kernel, inv_n=inv_n,
                              inner_relu=inner_relu),
            grid=(n_rt,),
            in_specs=[y_spec, st_spec, v_spec, v_spec, y_spec],
            out_specs=y_spec,
            out_shape=jax.ShapeDtypeStruct((R_pad, Cout), jnp.float32),
            compiler_params=_cparams(("parallel",)),
        )(y, stats, g2, b2, res)

    return out[:R].reshape(N, Ho, Wo, Cout)


# --------------------------------- pooling ----------------------------------

def _pool2d(x, *, k, pad, op_max):
    """Stride-2 pooling.  Repacks to (N, Hh, 2, Wh, 2*C) so every tap is a
    unit-stride slice inside the kernel (no k*k tap duplication in HBM)."""
    N, H, W, C = x.shape
    Ho = (H + 2 * pad - k) // 2 + 1
    Wo = (W + 2 * pad - k) // 2 + 1
    extra = 1 if k > 2 else 0
    Hh, Wh = Ho + extra, Wo + extra
    pv = float(jnp.finfo(jnp.float32).min) if op_max else 0.0

    xp = x
    if pad > 0:
        xp = jnp.pad(xp, ((0, 0), (pad, 0), (pad, 0), (0, 0)), constant_values=pv)
    ch = xp.shape[1]
    if ch < 2 * Hh:
        xp = jnp.pad(xp, ((0, 0), (0, 2 * Hh - ch), (0, 0), (0, 0)),
                     constant_values=pv)
    elif ch > 2 * Hh:
        xp = xp[:, :2 * Hh]
    cw = xp.shape[2]
    if cw < 2 * Wh:
        xp = jnp.pad(xp, ((0, 0), (0, 0), (0, 2 * Wh - cw), (0, 0)),
                     constant_values=pv)
    elif cw > 2 * Wh:
        xp = xp[:, :, :2 * Wh]
    xm = xp.reshape(N, Hh, 2, Wh, 2 * C)

    return pl.pallas_call(
        functools.partial(_pool_kernel, k=k, Ho=Ho, Wo=Wo, C=C, op_max=op_max),
        grid=(N,),
        in_specs=[pl.BlockSpec((1, Hh, 2, Wh, 2 * C),
                               lambda n: (n, 0, 0, 0, 0))],
        out_specs=pl.BlockSpec((1, Ho, Wo, C), lambda n: (n, 0, 0, 0)),
        out_shape=jax.ShapeDtypeStruct((N, Ho, Wo, C), jnp.float32),
        compiler_params=_cparams(("parallel",)),
    )(xm)


def maxpool2d(x):   # nn.MaxPool2d(kernel_size=3, stride=2, padding=1)
    return _pool2d(x, k=3, pad=1, op_max=True)


def avgpool2d(x):   # nn.AvgPool2d(kernel_size=2)
    return _pool2d(x, k=2, pad=0, op_max=False)


# ---------------------------------- linear ----------------------------------

def linear(x, w, b):
    B, _ = x.shape
    ncls = w.shape[1]
    return pl.pallas_call(
        _linear_kernel,
        out_shape=jax.ShapeDtypeStruct((B, ncls), jnp.float32),
        compiler_params=_cparams(),
    )(x.astype(jnp.float32), w, b.reshape(1, ncls))


# -------------------------------- parameters --------------------------------

def init_resnext_params(key, num_blocks, cardinality, bottleneck_width,
                        num_classes, expansion=2):
    key_box = [key]

    def nk():
        key_box[0], sub = jax.random.split(key_box[0])
        return sub

    def conv_p(cout, cin_pg, kh, kw):
        # NOTE: conv biases are omitted on purpose: under training-mode BN the
        # bias is exactly cancelled by the mean subtraction (zero effect).
        fan_in = cin_pg * kh * kw
        return (jax.random.normal(nk(), (cout, cin_pg, kh, kw), jnp.float32)
                / jnp.sqrt(fan_in))

    def bn_p(c):
        g = 1.0 + 0.1 * jax.random.normal(nk(), (c,), jnp.float32)
        bt = 0.1 * jax.random.normal(nk(), (c,), jnp.float32)
        return g, bt

    p = {}
    p['conv1_w'] = conv_p(64, 3, 7, 7)
    p['bn1_g'], p['bn1_b'] = bn_p(64)

    input_size = 64
    bw = bottleneck_width
    layers = []
    for nb, s0 in zip(num_blocks, (1, 2, 2, 2)):
        strides = [s0] + [1] * (nb - 1)
        blocks = []
        for s in strides:
            gc = cardinality * bw
            blk = {'stride': s, 'groups': cardinality}
            blk['conv1_w'] = conv_p(gc, input_size, 1, 1)
            blk['bn1_g'], blk['bn1_b'] = bn_p(gc)
            blk['conv2_w'] = conv_p(gc, gc // cardinality, 3, 3)
            blk['bn2_g'], blk['bn2_b'] = bn_p(gc)
            blk['conv3_w'] = conv_p(gc * expansion, gc, 1, 1)
            blk['bn3_g'], blk['bn3_b'] = bn_p(gc * expansion)
            blk['has_shortcut'] = (s != 1) or (input_size != gc * expansion)
            if blk['has_shortcut']:
                blk['sc_w'] = conv_p(gc * expansion, input_size, 1, 1)
                blk['sc_g'], blk['sc_bt'] = bn_p(gc * expansion)
            blocks.append(blk)
            input_size = expansion * cardinality * bw
        bw = 2 * bw
        layers.append(blocks)
    p['layers'] = layers

    in_features = cardinality * bw * 2   # matches nn.Linear(cardinality*bw*2, .)
    p['fc_w'] = (jax.random.normal(nk(), (in_features, num_classes), jnp.float32)
                 / jnp.sqrt(in_features))
    p['fc_b'] = 0.01 * jax.random.normal(nk(), (num_classes,), jnp.float32)
    return p


# -------------------------------- forward -----------------------------------

def group_block_forward(x, blk):
    N, H, W, Cin = x.shape
    o = conv_bn_act(x, blk['conv1_w'], blk['bn1_g'], blk['bn1_b'],
                    stride=1, padding=0, groups=1, relu=True)
    o = conv_bn_act(o, blk['conv2_w'], blk['bn2_g'], blk['bn2_b'],
                    stride=blk['stride'], padding=1, groups=blk['groups'],
                    relu=True)
    if blk['has_shortcut']:
        # main = relu(bn3(conv3(o)));  out = relu(bn_sc(conv_sc(x)) + main)
        main = conv_bn_act(o, blk['conv3_w'], blk['bn3_g'], blk['bn3_b'],
                           stride=1, padding=0, relu=True)
        rm, c = main.shape[0] * main.shape[1] * main.shape[2], main.shape[3]
        main_rows = main.reshape(rm, c)
        return conv_bn_act(x, blk['sc_w'], blk['sc_g'], blk['sc_bt'],
                           stride=blk['stride'], padding=0, relu=False,
                           residual=main_rows, inner_relu=False)
    # identity shortcut, fully fused: out = relu(x + relu(bn3(conv3(o))))
    res_rows = x.reshape(N * H * W, Cin)
    return conv_bn_act(o, blk['conv3_w'], blk['bn3_g'], blk['bn3_b'],
                       stride=1, padding=0, residual=res_rows, inner_relu=True)


def resnext_forward(x_nchw, p):
    x = jnp.transpose(x_nchw, (0, 2, 3, 1)).astype(jnp.float32)  # NCHW -> NHWC
    # stem: maxpool(bn1(conv1(x)))  -- the reference stem has NO ReLU.
    o = conv_bn_act(x, p['conv1_w'], p['bn1_g'], p['bn1_b'],
                    stride=2, padding=3, relu=False)
    o = maxpool2d(o)
    for layer in p['layers']:
        for blk in layer:
            o = group_block_forward(o, blk)
    o = avgpool2d(o)
    # flatten in NCHW order to reproduce PyTorch's output.view(B, -1)
    feat = jnp.transpose(o, (0, 3, 1, 2)).reshape(o.shape[0], -1)
    return linear(feat, p['fc_w'], p['fc_b'])


if __name__ == "__main__":
    key = jax.random.PRNGKey(0)
    kx, kp = jax.random.split(key)
    # Small config: ResNext(num_blocks=[1,2,1,1], cardinality=4, bottleneck_width=4).
    # Spatial size must be 128x64: the conv/stride chain + avgpool +
    # Linear(cardinality*bottleneck_width*2) only adds up for that input size.
    x = jax.random.normal(kx, (2, 3, 128, 64), jnp.float32)  # NCHW, like PyTorch
    params = init_resnext_params(kp, (1, 2, 1, 1), cardinality=4,
                                 bottleneck_width=4, num_classes=10)
    out = resnext_forward(x, params)
    jax.block_until_ready(out)
    assert out.shape == (2, 10) and out.dtype == jnp.float32
    print("KERNEL_OK")
</pallas_src>

<mosaic_0001>
module attributes {stable_mosaic.version = 11 : i64} {
  func.func @_matmul_stats_kernel(%arg0: i32, %arg1: memref<1x1024x147xbf16, #tpu.memory_space<vmem>>, %arg2: memref<1x147x64xbf16, #tpu.memory_space<vmem>>, %arg3: memref<1024x64xf32, #tpu.memory_space<vmem>>, %arg4: memref<1x2x64xf32, #tpu.memory_space<vmem>>) attributes {dimension_semantics = [#tpu.dimension_semantics<parallel>], iteration_bounds = array<i64: 4>, scalar_prefetch = 0 : i64, scratch_operands = 0 : i64, tpu.core_type = #tpu.core_type<tc>, window_params = [{transform_indices = @transform_0, window_bounds = array<i64: 1, 1024, 147>}, {pipeline_mode = #tpu.pipeline_mode<synchronous>, transform_indices = @transform_1, window_bounds = array<i64: 1, 147, 64>}, {transform_indices = @transform_2, window_bounds = array<i64: 1024, 64>}, {transform_indices = @transform_3, window_bounds = array<i64: 1, 2, 64>}]} {
    %c0 = arith.constant 0 : index
    %c0_0 = arith.constant 0 : index
    %c0_1 = arith.constant 0 : index
    %0 = vector.load %arg1[%c0, %c0_0, %c0_1] : memref<1x1024x147xbf16, #tpu.memory_space<vmem>>, vector<1x1024x147xbf16>
    %1 = vector.shape_cast %0 : vector<1x1024x147xbf16> to vector<1024x147xbf16>
    %c0_2 = arith.constant 0 : index
    %c0_3 = arith.constant 0 : index
    %c0_4 = arith.constant 0 : index
    %2 = vector.load %arg2[%c0_2, %c0_3, %c0_4] : memref<1x147x64xbf16, #tpu.memory_space<vmem>>, vector<1x147x64xbf16>
    %3 = vector.shape_cast %2 : vector<1x147x64xbf16> to vector<147x64xbf16>
    %cst = arith.constant dense<0.000000e+00> : vector<1024x64xf32>
    %4 = tpu.matmul %1, %3, %cst {dimension_numbers = #tpu.dot_dimension_numbers<[1], [0], [0], [1], [0, 0, 1, 1], [], []>} : vector<1024x147xbf16>, vector<147x64xbf16>, vector<1024x64xf32> -> vector<1024x64xf32>
    %c0_5 = arith.constant 0 : index
    %c0_6 = arith.constant 0 : index
    %5 = vector.load %arg3[%c0_5, %c0_6] : memref<1024x64xf32, #tpu.memory_space<vmem>>, vector<1024x64xf32>
    tpu.vector_store %arg3[%c0_5, %c0_6], %4 {strides = array<i32>} : memref<1024x64xf32, #tpu.memory_space<vmem>>, vector<1024x64xf32>,
    %cst_7 = arith.constant dense<0.000000e+00> : vector<64xf32>
    %6 = vector.multi_reduction <add>, %4, %cst_7 [0] : vector<1024x64xf32> to vector<64xf32>
    %7 = vector.shape_cast %6 : vector<64xf32> to vector<1x64xf32>
    %c0_8 = arith.constant 0 : index
    %c0_9 = arith.constant 0 : index
    %c0_10 = arith.constant 0 : index
    %8 = vector.load %arg4[%c0_8, %c0_9, %c0_10] : memref<1x2x64xf32, #tpu.memory_space<vmem>>, vector<1x1x64xf32>
    %9 = vector.shape_cast %8 : vector<1x1x64xf32> to vector<1x64xf32>
    %10 = vector.shape_cast %7 : vector<1x64xf32> to vector<1x1x64xf32>
    tpu.vector_store %arg4[%c0_8, %c0_9, %c0_10], %10 {strides = array<i32>} : memref<1x2x64xf32, #tpu.memory_space<vmem>>, vector<1x1x64xf32>,
    %11 = arith.mulf %4, %4 : vector<1024x64xf32>
    %cst_11 = arith.constant dense<0.000000e+00> : vector<64xf32>
    %12 = vector.multi_reduction <add>, %11, %cst_11 [0] : vector<1024x64xf32> to vector<64xf32>
    %13 = vector.shape_cast %12 : vector<64xf32> to vector<1x64xf32>
    %c0_12 = arith.constant 0 : index
    %c1 = arith.constant 1 : index
    %c0_13 = arith.constant 0 : index
    %14 = vector.load %arg4[%c0_12, %c1, %c0_13] : memref<1x2x64xf32, #tpu.memory_space<vmem>>, vector<1x1x64xf32>
    %15 = vector.shape_cast %14 : vector<1x1x64xf32> to vector<1x64xf32>
    %16 = vector.shape_cast %13 : vector<1x64xf32> to vector<1x1x64xf32>
    tpu.vector_store %arg4[%c0_12, %c1, %c0_13], %16 {strides = array<i32>} : memref<1x2x64xf32, #tpu.memory_space<vmem>>, vector<1x1x64xf32>,
    return
  }
  func.func @transform_0(%arg0: i32) -> (i32, i32, i32) {
    %c0_i32 = arith.constant 0 : i32
    %c0_i32_0 = arith.constant 0 : i32
    %c0_i32_1 = arith.constant 0 : i32
    return %c0_i32, %arg0, %c0_i32_0 : i32, i32, i32
  }
  func.func @transform_1(%arg0: i32) -> (i32, i32, i32) {
    %c0_i32 = arith.constant 0 : i32
    %c0_i32_0 = arith.constant 0 : i32
    %c0_i32_1 = arith.constant 0 : i32
    %c0_i32_2 = arith.constant 0 : i32
    return %c0_i32, %c0_i32_0, %c0_i32_1 : i32, i32, i32
  }
  func.func @transform_2(%arg0: i32) -> (i32, i32) {
    %c0_i32 = arith.constant 0 : i32
    %c0_i32_0 = arith.constant 0 : i32
    return %arg0, %c0_i32 : i32, i32
  }
  func.func @transform_3(%arg0: i32) -> (i32, i32, i32) {
    %c0_i32 = arith.constant 0 : i32
    %c0_i32_0 = arith.constant 0 : i32
    %c0_i32_1 = arith.constant 0 : i32
    return %arg0, %c0_i32, %c0_i32_0 : i32, i32, i32
  }
}

</mosaic_0001>

<llo_original>
// kernel: tpu_custom_call.1
$region0: #{tpu_custom_call.1}
  #allocation0 [shape = 'u32[]', space=smem, size = 0x4, offset = 0x4, fixed_abs, tag = 'smem constant byte address 0x4 - core index']
  #allocation1 [shape = 'u32[72,128]{1,0:T(1,128)}', space=vmem, size = 0x9000, scoped, tag = 'internal scratch']
  %s0 = inlined_call_operand.vmem [shape: bf16[1,4096,147], index: 0, kind: input, shape index: {}]
  %s1 = inlined_call_operand.vmem [shape: bf16[1,147,64], index: 1, kind: input, shape index: {}]
  %s2 = inlined_call_operand.vmem [shape: f32[4096,64], index: 2, kind: output, shape index: {0}]
  %s3 = inlined_call_operand.hbm [shape: f32[4,2,64], index: 3, kind: output, shape index: {1}]
  %4 = xla_tuple %s2, %s3
  %s5 = sld [smem:[#allocation0]]
  $region49: #{tpu_custom_call.1} parent=0
    _
  %s7 = ssub.s32 1, %s5
  %s8 = scalar_select 0, %s7, %s5
  $region1: #{tpu_custom_call.1} parent=0
    #allocation2 [shape = 'u8[2048]{0}', space=vmem, size = 0x800, scoped, tag = 'output window, operand 1']
    #allocation3 [shape = 's32[2]{0}', space=sflag, size = 0x8, scoped, tag = 'scoped memory for tpu_custom_call.1']
    %9 = vsyncpa [#allocation3], 0
    %s10 = scalar_lea.sflag [#allocation3], 1
    %11 = vsyncpa %s10, 0
    loop: start=0, step=1, limit=6
    $region2: #{tpu_custom_call.1} parent=1 // loop_pre_header
      _
    $region3: #{tpu_custom_call.1} parent=1 // loop_header
      %s13 = sphi 0, %s17
      %p14 = scmp.ge.s32.totalorder %s13, 6
      %s23 = sphi 0, %s25
      %s26 = sphi 0, %s23
      %s27 = sphi 0, %s26
      %s43 = sphi 0, %s27
      %s47 = sphi 0, %s47
      %s49 = sphi 0, %s47
      %s50 = sphi 0, %s49
      %s64 = sphi 0, %s50
      %s70 = sphi 0, %s72
      %s73 = sphi 0, %s70
      %s74 = sphi 0, %s73
      %s90 = sphi 0, %s74
      %s96 = sphi 0, %s98
      %s99 = sphi 0, %s96
      %s100 = sphi 0, %s99
      %s116 = sphi 0, %s100
    $region4: #{tpu_custom_call.1} parent=1 // loop_header_branch
      %16 = sbr.rel (%p14) target = $region8
    $region5: #{tpu_custom_call.1} parent=1 // loop_body
      %s18 = ssub.s32 %s13, 1
      %s19 = ssub.s32 %s13, 2
      %s20 = sadd.s32 %s13, 1
      %s21 = ssub.s32 %s13, %s20
      %p22 = scmp.eq.s32.totalorder %s21, 0
      %s24 = sadd.s32 %s23, 1
      %s25 = scalar_select %p22, %s23, %s24
      %p28 = pneg %p22
      %p29 = scmp.eq.s32.totalorder %s13, 3
      %p30 = por %p28, %p29
      %p31 = scmp.ne.s32.totalorder %s23, %s26
      %p32 = scmp.eq.s32.totalorder %s13, 0
      %p33 = por %p31, %p32
      %p34 = scmp.ne.s32.totalorder %s23, %s26
      %p35 = scmp.eq.s32.totalorder %s18, 3
      %p36 = por %p34, %p35
      %p37 = scmp.ne.s32.totalorder %s26, %s27
      %p38 = scmp.eq.s32.totalorder %s18, 0
      %p39 = por %p37, %p38
      %p40 = scmp.ne.s32.totalorder %s26, %s27
      %p41 = scmp.eq.s32.totalorder %s19, 3
      %p42 = por %p40, %p41
      %p44 = scmp.ne.s32.totalorder %s27, %s43
      %p45 = scmp.eq.s32.totalorder %s19, 0
      %p46 = por %p44, %p45
      %s48 = sadd.s32 %s47, 1
      %p51 = scmp.eq.s32.totalorder %s13, 3
      %p52 = scmp.ne.s32.totalorder %s47, %s49
      %p53 = scmp.eq.s32.totalorder %s13, 0
      %p54 = por %p52, %p53
      %p55 = scmp.ne.s32.totalorder %s47, %s49
      %p56 = scmp.eq.s32.totalorder %s18, 3
      %p57 = por %p55, %p56
      %p58 = scmp.ne.s32.totalorder %s49, %s50
      %p59 = scmp.eq.s32.totalorder %s18, 0
      %p60 = por %p58, %p59
      %p61 = scmp.ne.s32.totalorder %s49, %s50
      %p62 = scmp.eq.s32.totalorder %s19, 3
      %p63 = por %p61, %p62
      %p65 = scmp.ne.s32.totalorder %s50, %s64
      %p66 = scmp.eq.s32.totalorder %s19, 0
      %p67 = por %p65, %p66
      %s68 = ssub.s32 %s13, %s20
      %p69 = scmp.eq.s32.totalorder %s68, 0
      %s71 = sadd.s32 %s70, 1
      %s72 = scalar_select %p69, %s70, %s71
      %p75 = pneg %p69
      %p76 = scmp.eq.s32.totalorder %s13, 3
      %p77 = por %p75, %p76
      %p78 = scmp.ne.s32.totalorder %s70, %s73
      %p79 = scmp.eq.s32.totalorder %s13, 0
      %p80 = por %p78, %p79
      %p81 = scmp.ne.s32.totalorder %s70, %s73
      %p82 = scmp.eq.s32.totalorder %s18, 3
      %p83 = por %p81, %p82
      %p84 = scmp.ne.s32.totalorder %s73, %s74
      %p85 = scmp.eq.s32.totalorder %s18, 0
      %p86 = por %p84, %p85
      %p87 = scmp.ne.s32.totalorder %s73, %s74
      %p88 = scmp.eq.s32.totalorder %s19, 3
      %p89 = por %p87, %p88
      %p91 = scmp.ne.s32.totalorder %s74, %s90
      %p92 = scmp.eq.s32.totalorder %s19, 0
      %p93 = por %p91, %p92
      %s94 = ssub.s32 %s13, %s20
      %p95 = scmp.eq.s32.totalorder %s94, 0
      %s97 = sadd.s32 %s96, 1
      %s98 = scalar_select %p95, %s96, %s97
      %p101 = pneg %p95
      %p102 = scmp.eq.s32.totalorder %s13, 3
      %p103 = por %p101, %p102
      %p104 = scmp.ne.s32.totalorder %s96, %s99
      %p105 = scmp.eq.s32.totalorder %s13, 0
      %p106 = por %p104, %p105
      %p107 = scmp.ne.s32.totalorder %s96, %s99
      %p108 = scmp.eq.s32.totalorder %s18, 3
      %p109 = por %p107, %p108
      %p110 = scmp.ne.s32.totalorder %s99, %s100
      %p111 = scmp.eq.s32.totalorder %s18, 0
      %p112 = por %p110, %p111
      %p113 = scmp.ne.s32.totalorder %s99, %s100
      %p114 = scmp.eq.s32.totalorder %s19, 3
      %p115 = por %p113, %p114
      %p117 = scmp.ne.s32.totalorder %s100, %s116
      %p118 = scmp.eq.s32.totalorder %s19, 0
      %p119 = por %p117, %p118
      %p120 = scmp.le.s32.totalorder 1, %s13
      %p121 = scmp.lt.s32.totalorder %s13, 5
      %p122 = pnand %p120, %p121
      %p123 = pneg %p122
      // Predicated region
      $region9: #{tpu_custom_call.1} parent=5 // pred_check
        _
      $region10: #{tpu_custom_call.1} parent=5 // pred_check_branch
        %125 = sbr.rel (%p122) target = $region12
      $region11: #{tpu_custom_call.1} parent=5 // pred_region
        %s126 = ssub.s32 %s13, 1
        // Predicated region
        $region13: #{tpu_custom_call.1} parent=11 // pred_check
          %p127 = pneg %p60
        $region14: #{tpu_custom_call.1} parent=11 // pred_check_branch
          %129 = sbr.rel (%p127) target = $region16
        $region15: #{tpu_custom_call.1} parent=11 // pred_region
          _
        $region16: #{tpu_custom_call.1} parent=11 // pred_fallthru
          _
      $region12: #{tpu_custom_call.1} parent=5 // pred_fallthru
        _
      %p130 = scmp.lt.s32.totalorder %s13, 4
      // Predicated region
      $region17: #{tpu_custom_call.1} parent=5 // pred_check
        %p131 = pneg %p130
      $region18: #{tpu_custom_call.1} parent=5 // pred_check_branch
        %133 = sbr.rel (%p131) target = $region20
      $region19: #{tpu_custom_call.1} parent=5 // pred_region
        // Predicated region
        $region21: #{tpu_custom_call.1} parent=19 // pred_check
          %p134 = pneg %p33
        $region22: #{tpu_custom_call.1} parent=19 // pred_check_branch
          %136 = sbr.rel (%p134) target = $region24
        $region23: #{tpu_custom_call.1} parent=19 // pred_region
          %s137 = smul.u32 128, %s13
          %p138 = scmp.lt.s32.totalorder %s137, 511
          %s139 = scalar_select %p138, %s137, 511
          %s140 = smul.addr %s139, 2
          %s141 = smul.addr %s140, 4
          %s142 = scalar_lea.vmem %s0, %s141
          %s143 = smul.u32 128, %s13
        $region24: #{tpu_custom_call.1} parent=19 // pred_fallthru
          _
      $region20: #{tpu_custom_call.1} parent=5 // pred_fallthru
        _
      %p144 = scmp.le.s32.totalorder 1, %s13
      %p145 = scmp.lt.s32.totalorder %s13, 5
      %p146 = pnand %p144, %p145
      %p147 = pneg %p146
      // Predicated region
      $region25: #{tpu_custom_call.1} parent=5 // pred_check
        _
      $region26: #{tpu_custom_call.1} parent=5 // pred_check_branch
        %149 = sbr.rel (%p146) target = $region28
      $region27: #{tpu_custom_call.1} parent=5 // pred_region
        %s150 = ssub.s32 %s13, 1
        %s151 = smul.u32 128, %s18
        %p152 = scmp.lt.s32.totalorder %s151, 511
        %s153 = scalar_select %p152, %s151, 511
        %s154 = smul.addr %s153, 2
        %s155 = smul.addr %s154, 4
        %s156 = scalar_lea.vmem %s0, %s155
        %p157 = pneg %p39
        %p158 = pneg %p36
        %p159 = pneg %p60
        %p160 = pneg %p57
        %p161 = pneg %p86
        %p162 = pneg %p83
        %s163 = smul.u32 128, %s18
        %p164 = scmp.lt.s32.totalorder %s163, 511
        %s165 = scalar_select %p164, %s163, 511
        %s166 = smul.addr %s165, 8
        %s167 = scalar_lea.vmem %s2, %s166
        %p168 = pneg %p112
        %p169 = pneg %p109
        %s170 = sand.u32 %s99, 1
        %s171 = scalar_lea.sflag [#allocation3], %s170
        %s172 = sand.u32 %s99, 1
        %s173 = smul.addr %s172, 2
        %s174 = scalar_lea.vmem [#allocation2], %s173
        %s175 = smul.u32 128, %s18
        %p176 = scmp.lt.s32.totalorder %s175, 511
        %s177 = scalar_select %p176, %s175, 511
        %s178 = smul.addr %s177, 2
        %s179 = smul.addr %s178, 4
        %s180 = scalar_lea.vmem %s0, %s179
        %s181 = smul.u32 128, %s18
        %s182 = smul.u32 128, %s18
        %p183 = scmp.lt.s32.totalorder %s182, 511
        %s184 = scalar_select %p183, %s182, 511
        %s185 = smul.addr %s184, 8
        %s186 = scalar_lea.vmem %s2, %s185
        %s187 = smul.u32 128, %s18
        %v189 = vld [vmem:[%s180] sm:$0xff]
        %v190 = vld [vmem:[%s180 + $0x8] sm:$0xff]
        %v191 = vld [vmem:[%s180 + $0x10] sm:$0xff]
        %v192 = vld [vmem:[%s180 + $0x18] sm:$0xff]
        %v193 = vld [vmem:[%s180 + $0x20] sm:$0xff]
        %v194 = vld [vmem:[%s180 + $0x28] sm:$0xff]
        %v195 = vld [vmem:[%s180 + $0x30] sm:$0xff]
        %v196 = vld [vmem:[%s180 + $0x38] sm:$0xff]
        %v197 = vld [vmem:[%s180 + $0x40] sm:$0xff]
        %v198 = vld [vmem:[%s180 + $0x48] sm:$0xff]
        %v199 = vld [vmem:[%s180 + $0x50] sm:$0xff]
        %v200 = vld [vmem:[%s180 + $0x58] sm:$0xff]
        %v201 = vld [vmem:[%s180 + $0x60] sm:$0xff]
        %v202 = vld [vmem:[%s180 + $0x68] sm:$0xff]
        %v203 = vld [vmem:[%s180 + $0x70] sm:$0xff]
        %v204 = vld [vmem:[%s180 + $0x78] sm:$0xff]
        %v205 = vld [vmem:[%s180 + $0x80] sm:$0xff]
        %v206 = vld [vmem:[%s180 + $0x88] sm:$0xff]
        %v207 = vld [vmem:[%s180 + $0x90] sm:$0xff]
        %v208 = vld [vmem:[%s180 + $0x98] sm:$0xff]
        %v209 = vld [vmem:[%s180 + $0xa0] sm:$0xff]
        %v210 = vld [vmem:[%s180 + $0xa8] sm:$0xff]
        %v211 = vld [vmem:[%s180 + $0xb0] sm:$0xff]
        %v212 = vld [vmem:[%s180 + $0xb8] sm:$0xff]
        %v213 = vld [vmem:[%s180 + $0xc0] sm:$0xff]
        %v214 = vld [vmem:[%s180 + $0xc8] sm:$0xff]
        %v215 = vld [vmem:[%s180 + $0xd0] sm:$0xff]
        %v216 = vld [vmem:[%s180 + $0xd8] sm:$0xff]
        %v217 = vld [vmem:[%s180 + $0xe0] sm:$0xff]
        %v218 = vld [vmem:[%s180 + $0xe8] sm:$0xff]
        %v219 = vld [vmem:[%s180 + $0xf0] sm:$0xff]
        %v220 = vld [vmem:[%s180 + $0xf8] sm:$0xff]
        %v221 = vld [vmem:[%s180 + $0x100] sm:$0xff]
        %v222 = vld [vmem:[%s180 + $0x108] sm:$0xff]
        %v223 = vld [vmem:[%s180 + $0x110] sm:$0xff]
        %v224 = vld [vmem:[%s180 + $0x118] sm:$0xff]
        %v225 = vld [vmem:[%s180 + $0x120] sm:$0xff]
        %v226 = vld [vmem:[%s180 + $0x128] sm:$0xff]
        %v227 = vld [vmem:[%s180 + $0x130] sm:$0xff]
        %v228 = vld [vmem:[%s180 + $0x138] sm:$0xff]
        %v229 = vld [vmem:[%s180 + $0x140] sm:$0xff]
        %v230 = vld [vmem:[%s180 + $0x148] sm:$0xff]
        %v231 = vld [vmem:[%s180 + $0x150] sm:$0xff]
        %v232 = vld [vmem:[%s180 + $0x158] sm:$0xff]
        %v233 = vld [vmem:[%s180 + $0x160] sm:$0xff]
        %v234 = vld [vmem:[%s180 + $0x168] sm:$0xff]
        %v235 = vld [vmem:[%s180 + $0x170] sm:$0xff]
        %v236 = vld [vmem:[%s180 + $0x178] sm:$0xff]
        %v237 = vld [vmem:[%s180 + $0x180] sm:$0xff]
        %v238 = vld [vmem:[%s180 + $0x188] sm:$0xff]
        %v239 = vld [vmem:[%s180 + $0x190] sm:$0xff]
        %v240 = vld [vmem:[%s180 + $0x198] sm:$0xff]
        %v241 = vld [vmem:[%s180 + $0x1a0] sm:$0xff]
        %v242 = vld [vmem:[%s180 + $0x1a8] sm:$0xff]
        %v243 = vld [vmem:[%s180 + $0x1b0] sm:$0xff]
        %v244 = vld [vmem:[%s180 + $0x1b8] sm:$0xff]
        %v245 = vld [vmem:[%s180 + $0x1c0] sm:$0xff]
        %v246 = vld [vmem:[%s180 + $0x1c8] sm:$0xff]
        %v247 = vld [vmem:[%s180 + $0x1d0] sm:$0xff]
        %v248 = vld [vmem:[%s180 + $0x1d8] sm:$0xff]
        %v249 = vld [vmem:[%s180 + $0x1e0] sm:$0xff]
        %v250 = vld [vmem:[%s180 + $0x1e8] sm:$0xff]
        %v251 = vld [vmem:[%s180 + $0x1f0] sm:$0xff]
        %v252 = vld [vmem:[%s180 + $0x1f8] sm:$0xff]
        %v253 = vld [vmem:[%s180 + $0x200] sm:$0xff]
        %v254 = vld [vmem:[%s180 + $0x208] sm:$0xff]
        %v255 = vld [vmem:[%s180 + $0x210] sm:$0xff]
        %v256 = vld [vmem:[%s180 + $0x218] sm:$0xff]
        %v257 = vld [vmem:[%s180 + $0x220] sm:$0xff]
        %v258 = vld [vmem:[%s180 + $0x228] sm:$0xff]
        %v259 = vld [vmem:[%s180 + $0x230] sm:$0xff]
        %v260 = vld [vmem:[%s180 + $0x238] sm:$0xff]
        %v261 = vld [vmem:[%s180 + $0x240] sm:$0xff]
        %v262 = vld [vmem:[%s180 + $0x248] sm:$0xff]
        %v263 = vld [vmem:[%s180 + $0x250] sm:$0xff]
        %v264 = vld [vmem:[%s180 + $0x258] sm:$0xff]
        %v265 = vld [vmem:[%s180 + $0x260] sm:$0xff]
        %v266 = vld [vmem:[%s180 + $0x268] sm:$0xff]
        %v267 = vld [vmem:[%s180 + $0x270] sm:$0xff]
        %v268 = vld [vmem:[%s180 + $0x278] sm:$0xff]
        %v269 = vld [vmem:[%s180 + $0x280] sm:$0xff]
        %v270 = vld [vmem:[%s180 + $0x288] sm:$0xff]
        %v271 = vld [vmem:[%s180 + $0x290] sm:$0xff]
        %v272 = vld [vmem:[%s180 + $0x298] sm:$0xff]
        %v273 = vld [vmem:[%s180 + $0x2a0] sm:$0xff]
        %v274 = vld [vmem:[%s180 + $0x2a8] sm:$0xff]
        %v275 = vld [vmem:[%s180 + $0x2b0] sm:$0xff]
        %v276 = vld [vmem:[%s180 + $0x2b8] sm:$0xff]
        %v277 = vld [vmem:[%s180 + $0x2c0] sm:$0xff]
        %v278 = vld [vmem:[%s180 + $0x2c8] sm:$0xff]
        %v279 = vld [vmem:[%s180 + $0x2d0] sm:$0xff]
        %v280 = vld [vmem:[%s180 + $0x2d8] sm:$0xff]
        %v281 = vld [vmem:[%s180 + $0x2e0] sm:$0xff]
        %v282 = vld [vmem:[%s180 + $0x2e8] sm:$0xff]
        %v283 = vld [vmem:[%s180 + $0x2f0] sm:$0xff]
        %v284 = vld [vmem:[%s180 + $0x2f8] sm:$0xff]
        %v285 = vld [vmem:[%s180 + $0x300] sm:$0xff]
        %v286 = vld [vmem:[%s180 + $0x308] sm:$0xff]
        %v287 = vld [vmem:[%s180 + $0x310] sm:$0xff]
        %v288 = vld [vmem:[%s180 + $0x318] sm:$0xff]
        %v289 = vld [vmem:[%s180 + $0x320] sm:$0xff]
        %v290 = vld [vmem:[%s180 + $0x328] sm:$0xff]
        %v291 = vld [vmem:[%s180 + $0x330] sm:$0xff]
        %v292 = vld [vmem:[%s180 + $0x338] sm:$0xff]
        %v293 = vld [vmem:[%s180 + $0x340] sm:$0xff]
        %v294 = vld [vmem:[%s180 + $0x348] sm:$0xff]
        %v295 = vld [vmem:[%s180 + $0x350] sm:$0xff]
        %v296 = vld [vmem:[%s180 + $0x358] sm:$0xff]
        %v297 = vld [vmem:[%s180 + $0x360] sm:$0xff]
        %v298 = vld [vmem:[%s180 + $0x368] sm:$0xff]
        %v299 = vld [vmem:[%s180 + $0x370] sm:$0xff]
        %v300 = vld [vmem:[%s180 + $0x378] sm:$0xff]
        %v301 = vld [vmem:[%s180 + $0x380] sm:$0xff]
        %v302 = vld [vmem:[%s180 + $0x388] sm:$0xff]
        %v303 = vld [vmem:[%s180 + $0x390] sm:$0xff]
        %v304 = vld [vmem:[%s180 + $0x398] sm:$0xff]
        %v305 = vld [vmem:[%s180 + $0x3a0] sm:$0xff]
        %v306 = vld [vmem:[%s180 + $0x3a8] sm:$0xff]
        %v307 = vld [vmem:[%s180 + $0x3b0] sm:$0xff]
        %v308 = vld [vmem:[%s180 + $0x3b8] sm:$0xff]
        %v309 = vld [vmem:[%s180 + $0x3c0] sm:$0xff]
        %v310 = vld [vmem:[%s180 + $0x3c8] sm:$0xff]
        %v311 = vld [vmem:[%s180 + $0x3d0] sm:$0xff]
        %v312 = vld [vmem:[%s180 + $0x3d8] sm:$0xff]
        %v313 = vld [vmem:[%s180 + $0x3e0] sm:$0xff]
        %v314 = vld [vmem:[%s180 + $0x3e8] sm:$0xff]
        %v315 = vld [vmem:[%s180 + $0x3f0] sm:$0xff]
        %v316 = vld [vmem:[%s180 + $0x3f8] sm:$0xff]
        %v317 = vld [vmem:[%s1] sm:$0xf]
        %v318 = vld [vmem:[%s1 + $0x4] sm:$0xf]
        %v319 = vld [vmem:[%s1 + $0x8] sm:$0xf]
        %v320 = vld [vmem:[%s1 + $0xc] sm:$0xf]
        %v321 = vld [vmem:[%s1 + $0x10] sm:$0xf]
        %v322 = vld [vmem:[%s1 + $0x14] sm:$0xf]
        %v323 = vld [vmem:[%s1 + $0x18] sm:$0xf]
        %v324 = vld [vmem:[%s1 + $0x1c] sm:$0xf]
        %v325 = vld [vmem:[%s1 + $0x20] sm:$0xf]
        %v326 = vld [vmem:[%s1 + $0x24] sm:$0xf]
        %v327 = vld [vmem:[%s1 + $0x28] sm:$0xf]
        %v328 = vld [vmem:[%s1 + $0x2c] sm:$0xf]
        %v329 = vld [vmem:[%s1 + $0x30] sm:$0xf]
        %v330 = vld [vmem:[%s1 + $0x34] sm:$0xf]
        %v331 = vld [vmem:[%s1 + $0x38] sm:$0xf]
        %v332 = vld [vmem:[%s1 + $0x3c] sm:$0xf]
        %v333 = vld [vmem:[%s1 + $0x40] sm:$0xf]
        %v334 = vld [vmem:[%s1 + $0x44] sm:$0xf]
        %v335 = vld [vmem:[%s1 + $0x48] sm:$0x3]
        %v464 = vunpack.c.l.b16 %v189
        %v465 = vunpack.c.h.b16 %v189
        %v466 = vunpack.c.l.b16 %v190
        %v467 = vunpack.c.h.b16 %v190
        %v468 = vunpack.c.l.b16 %v191
        %v469 = vunpack.c.h.b16 %v191
        %v470 = vunpack.c.l.b16 %v192
        %v471 = vunpack.c.h.b16 %v192
        %v472 = vunpack.c.l.b16 %v193
        %v473 = vunpack.c.h.b16 %v193
        %v474 = vunpack.c.l.b16 %v194
        %v475 = vunpack.c.h.b16 %v194
        %v476 = vunpack.c.l.b16 %v195
        %v477 = vunpack.c.h.b16 %v195
        %v478 = vunpack.c.l.b16 %v196
        %v479 = vunpack.c.h.b16 %v196
        %v480 = vunpack.c.l.b16 %v197
        %v481 = vunpack.c.h.b16 %v197
        %v482 = vunpack.c.l.b16 %v198
        %v483 = vunpack.c.h.b16 %v198
        %v484 = vunpack.c.l.b16 %v199
        %v485 = vunpack.c.h.b16 %v199
        %v486 = vunpack.c.l.b16 %v200
        %v487 = vunpack.c.h.b16 %v200
        %v488 = vunpack.c.l.b16 %v201
        %v489 = vunpack.c.h.b16 %v201
        %v490 = vunpack.c.l.b16 %v202
        %v491 = vunpack.c.h.b16 %v202
        %v492 = vunpack.c.l.b16 %v203
        %v493 = vunpack.c.h.b16 %v203
        %v494 = vunpack.c.l.b16 %v204
        %v495 = vunpack.c.h.b16 %v204
        %v496 = vunpack.c.l.b16 %v205
        %v497 = vunpack.c.h.b16 %v205
        %v498 = vunpack.c.l.b16 %v206
        %v499 = vunpack.c.h.b16 %v206
        %v500 = vunpack.c.l.b16 %v207
        %v501 = vunpack.c.h.b16 %v207
        %v502 = vunpack.c.l.b16 %v208
        %v503 = vunpack.c.h.b16 %v208
        %v504 = vunpack.c.l.b16 %v209
        %v505 = vunpack.c.h.b16 %v209
        %v506 = vunpack.c.l.b16 %v210
        %v507 = vunpack.c.h.b16 %v210
        %v508 = vunpack.c.l.b16 %v211
        %v509 = vunpack.c.h.b16 %v211
        %v510 = vunpack.c.l.b16 %v212
        %v511 = vunpack.c.h.b16 %v212
        %v512 = vunpack.c.l.b16 %v213
        %v513 = vunpack.c.h.b16 %v213
        %v514 = vunpack.c.l.b16 %v214
        %v515 = vunpack.c.h.b16 %v214
        %v516 = vunpack.c.l.b16 %v215
        %v517 = vunpack.c.h.b16 %v215
        %v518 = vunpack.c.l.b16 %v216
        %v519 = vunpack.c.h.b16 %v216
        %v520 = vunpack.c.l.b16 %v217
        %v521 = vunpack.c.h.b16 %v217
        %v522 = vunpack.c.l.b16 %v218
        %v523 = vunpack.c.h.b16 %v218
        %v524 = vunpack.c.l.b16 %v219
        %v525 = vunpack.c.h.b16 %v219
        %v526 = vunpack.c.l.b16 %v220
        %v527 = vunpack.c.h.b16 %v220
        %v528 = vunpack.c.l.b16 %v221
        %v529 = vunpack.c.h.b16 %v221
        %v530 = vunpack.c.l.b16 %v222
        %v531 = vunpack.c.h.b16 %v222
        %v532 = vunpack.c.l.b16 %v223
        %v533 = vunpack.c.h.b16 %v223
        %v534 = vunpack.c.l.b16 %v224
        %v535 = vunpack.c.h.b16 %v224
        %v536 = vunpack.c.l.b16 %v225
        %v537 = vunpack.c.h.b16 %v225
        %v538 = vunpack.c.l.b16 %v226
        %v539 = vunpack.c.h.b16 %v226
        %v540 = vunpack.c.l.b16 %v227
        %v541 = vunpack.c.h.b16 %v227
        %v542 = vunpack.c.l.b16 %v228
        %v543 = vunpack.c.h.b16 %v228
        %v544 = vunpack.c.l.b16 %v229
        %v545 = vunpack.c.h.b16 %v229
        %v546 = vunpack.c.l.b16 %v230
        %v547 = vunpack.c.h.b16 %v230
        %v548 = vunpack.c.l.b16 %v231
        %v549 = vunpack.c.h.b16 %v231
        %v550 = vunpack.c.l.b16 %v232
        %v551 = vunpack.c.h.b16 %v232
        %v552 = vunpack.c.l.b16 %v233
        %v553 = vunpack.c.h.b16 %v233
        %v554 = vunpack.c.l.b16 %v234
        %v555 = vunpack.c.h.b16 %v234
        %v556 = vunpack.c.l.b16 %v235
        %v557 = vunpack.c.h.b16 %v235
        %v558 = vunpack.c.l.b16 %v236
        %v559 = vunpack.c.h.b16 %v236
        %v560 = vunpack.c.l.b16 %v237
        %v561 = vunpack.c.h.b16 %v237
        %v562 = vunpack.c.l.b16 %v238
        %v563 = vunpack.c.h.b16 %v238
        %v564 = vunpack.c.l.b16 %v239
        %v565 = vunpack.c.h.b16 %v239
        %v566 = vunpack.c.l.b16 %v240
        %v567 = vunpack.c.h.b16 %v240
        %v568 = vunpack.c.l.b16 %v241
        %v569 = vunpack.c.h.b16 %v241
        %v570 = vunpack.c.l.b16 %v242
        %v571 = vunpack.c.h.b16 %v242
        %v572 = vunpack.c.l.b16 %v243
        %v573 = vunpack.c.h.b16 %v243
        %v574 = vunpack.c.l.b16 %v244
        %v575 = vunpack.c.h.b16 %v244
        %v576 = vunpack.c.l.b16 %v245
        %v577 = vunpack.c.h.b16 %v245
        %v578 = vunpack.c.l.b16 %v246
        %v579 = vunpack.c.h.b16 %v246
        %v580 = vunpack.c.l.b16 %v247
        %v581 = vunpack.c.h.b16 %v247
        %v582 = vunpack.c.l.b16 %v248
        %v583 = vunpack.c.h.b16 %v248
        %v584 = vunpack.c.l.b16 %v249
        %v585 = vunpack.c.h.b16 %v249
        %v586 = vunpack.c.l.b16 %v250
        %v587 = vunpack.c.h.b16 %v250
        %v588 = vunpack.c.l.b16 %v251
        %v589 = vunpack.c.h.b16 %v251
        %v590 = vunpack.c.l.b16 %v252
        %v591 = vunpack.c.h.b16 %v252
        %v592 = vunpack.c.l.b16 %v253
        %v593 = vunpack.c.h.b16 %v253
        %v594 = vunpack.c.l.b16 %v254
        %v595 = vunpack.c.h.b16 %v254
        %v596 = vunpack.c.l.b16 %v255
        %v597 = vunpack.c.h.b16 %v255
        %v598 = vunpack.c.l.b16 %v256
        %v599 = vunpack.c.h.b16 %v256
        %v600 = vunpack.c.l.b16 %v257
        %v601 = vunpack.c.h.b16 %v257
        %v602 = vunpack.c.l.b16 %v258
        %v603 = vunpack.c.h.b16 %v258
        %v604 = vunpack.c.l.b16 %v259
        %v605 = vunpack.c.h.b16 %v259
        %v606 = vunpack.c.l.b16 %v260
        %v607 = vunpack.c.h.b16 %v260
        %v608 = vunpack.c.l.b16 %v261
        %v609 = vunpack.c.h.b16 %v261
        %v610 = vunpack.c.l.b16 %v262
        %v611 = vunpack.c.h.b16 %v262
        %v612 = vunpack.c.l.b16 %v263
        %v613 = vunpack.c.h.b16 %v263
        %v614 = vunpack.c.l.b16 %v264
        %v615 = vunpack.c.h.b16 %v264
        %v616 = vunpack.c.l.b16 %v265
        %v617 = vunpack.c.h.b16 %v265
        %v618 = vunpack.c.l.b16 %v266
        %v619 = vunpack.c.h.b16 %v266
        %v620 = vunpack.c.l.b16 %v267
        %v621 = vunpack.c.h.b16 %v267
        %v622 = vunpack.c.l.b16 %v268
        %v623 = vunpack.c.h.b16 %v268
        %v624 = vunpack.c.l.b16 %v269
        %v625 = vunpack.c.h.b16 %v269
        %v626 = vunpack.c.l.b16 %v270
        %v627 = vunpack.c.h.b16 %v270
        %v628 = vunpack.c.l.b16 %v271
        %v629 = vunpack.c.h.b16 %v271
        %v630 = vunpack.c.l.b16 %v272
        %v631 = vunpack.c.h.b16 %v272
        %v632 = vunpack.c.l.b16 %v273
        %v633 = vunpack.c.h.b16 %v273
        %v634 = vunpack.c.l.b16 %v274
        %v635 = vunpack.c.h.b16 %v274
        %v636 = vunpack.c.l.b16 %v275
        %v637 = vunpack.c.h.b16 %v275
        %v638 = vunpack.c.l.b16 %v276
        %v639 = vunpack.c.h.b16 %v276
        %v640 = vunpack.c.l.b16 %v277
        %v641 = vunpack.c.h.b16 %v277
        %v642 = vunpack.c.l.b16 %v278
        %v643 = vunpack.c.h.b16 %v278
        %v644 = vunpack.c.l.b16 %v279
        %v645 = vunpack.c.h.b16 %v279
        %v646 = vunpack.c.l.b16 %v280
        %v647 = vunpack.c.h.b16 %v280
        %v648 = vunpack.c.l.b16 %v281
        %v649 = vunpack.c.h.b16 %v281
        %v650 = vunpack.c.l.b16 %v282
        %v651 = vunpack.c.h.b16 %v282
        %v652 = vunpack.c.l.b16 %v283
        %v653 = vunpack.c.h.b16 %v283
        %v654 = vunpack.c.l.b16 %v284
        %v655 = vunpack.c.h.b16 %v284
        %v656 = vunpack.c.l.b16 %v285
        %v657 = vunpack.c.h.b16 %v285
        %v658 = vunpack.c.l.b16 %v286
        %v659 = vunpack.c.h.b16 %v286
        %v660 = vunpack.c.l.b16 %v287
        %v661 = vunpack.c.h.b16 %v287
        %v662 = vunpack.c.l.b16 %v288
        %v663 = vunpack.c.h.b16 %v288
        %v664 = vunpack.c.l.b16 %v289
        %v665 = vunpack.c.h.b16 %v289
        %v666 = vunpack.c.l.b16 %v290
        %v667 = vunpack.c.h.b16 %v290
        %v668 = vunpack.c.l.b16 %v291
        %v669 = vunpack.c.h.b16 %v291
        %v670 = vunpack.c.l.b16 %v292
        %v671 = vunpack.c.h.b16 %v292
        %v672 = vunpack.c.l.b16 %v293
        %v673 = vunpack.c.h.b16 %v293
        %v674 = vunpack.c.l.b16 %v294
        %v675 = vunpack.c.h.b16 %v294
        %v676 = vunpack.c.l.b16 %v295
        %v677 = vunpack.c.h.b16 %v295
        %v678 = vunpack.c.l.b16 %v296
        %v679 = vunpack.c.h.b16 %v296
        %v680 = vunpack.c.l.b16 %v297
        %v681 = vunpack.c.h.b16 %v297
        %v682 = vunpack.c.l.b16 %v298
        %v683 = vunpack.c.h.b16 %v298
        %v684 = vunpack.c.l.b16 %v299
        %v685 = vunpack.c.h.b16 %v299
        %v686 = vunpack.c.l.b16 %v300
        %v687 = vunpack.c.h.b16 %v300
        %v688 = vunpack.c.l.b16 %v301
        %v689 = vunpack.c.h.b16 %v301
        %v690 = vunpack.c.l.b16 %v302
        %v691 = vunpack.c.h.b16 %v302
        %v692 = vunpack.c.l.b16 %v303
        %v693 = vunpack.c.h.b16 %v303
        %v694 = vunpack.c.l.b16 %v304
        %v695 = vunpack.c.h.b16 %v304
        %v696 = vunpack.c.l.b16 %v305
        %v697 = vunpack.c.h.b16 %v305
        %v698 = vunpack.c.l.b16 %v306
        %v699 = vunpack.c.h.b16 %v306
        %v700 = vunpack.c.l.b16 %v307
        %v701 = vunpack.c.h.b16 %v307
        %v702 = vunpack.c.l.b16 %v308
        %v703 = vunpack.c.h.b16 %v308
        %v704 = vunpack.c.l.b16 %v309
        %v705 = vunpack.c.h.b16 %v309
        %v706 = vunpack.c.l.b16 %v310
        %v707 = vunpack.c.h.b16 %v310
        %v708 = vunpack.c.l.b16 %v311
        %v709 = vunpack.c.h.b16 %v311
        %v710 = vunpack.c.l.b16 %v312
        %v711 = vunpack.c.h.b16 %v312
        %v712 = vunpack.c.l.b16 %v313
        %v713 = vunpack.c.h.b16 %v313
        %v714 = vunpack.c.l.b16 %v314
        %v715 = vunpack.c.h.b16 %v314
        %v716 = vunpack.c.l.b16 %v315
        %v717 = vunpack.c.h.b16 %v315
        %v718 = vunpack.c.l.b16 %v316
        %v719 = vunpack.c.h.b16 %v316
        %v720 = vpack.c.b16 %v466, %v464
        %v721 = vpack.c.b16 %v467, %v465
        %v722 = vpack.c.b16 %v470, %v468
        %v723 = vpack.c.b16 %v471, %v469
        %v724 = vpack.c.b16 %v474, %v472
        %v725 = vpack.c.b16 %v475, %v473
        %v726 = vpack.c.b16 %v478, %v476
        %v727 = vpack.c.b16 %v479, %v477
        %v728 = vpack.c.b16 %v482, %v480
        %v729 = vpack.c.b16 %v483, %v481
        %v730 = vpack.c.b16 %v486, %v484
        %v731 = vpack.c.b16 %v487, %v485
        %v732 = vpack.c.b16 %v490, %v488
        %v733 = vpack.c.b16 %v491, %v489
        %v734 = vpack.c.b16 %v494, %v492
        %v735 = vpack.c.b16 %v495, %v493
        %v736 = vpack.c.b16 %v498, %v496
        %v737 = vpack.c.b16 %v499, %v497
        %v738 = vpack.c.b16 %v502, %v500
        %v739 = vpack.c.b16 %v503, %v501
        %v740 = vpack.c.b16 %v506, %v504
        %v741 = vpack.c.b16 %v507, %v505
        %v742 = vpack.c.b16 %v510, %v508
        %v743 = vpack.c.b16 %v511, %v509
        %v744 = vpack.c.b16 %v514, %v512
        %v745 = vpack.c.b16 %v515, %v513
        %v746 = vpack.c.b16 %v518, %v516
        %v747 = vpack.c.b16 %v519, %v517
        %v748 = vpack.c.b16 %v522, %v520
        %v749 = vpack.c.b16 %v523, %v521
        %v750 = vpack.c.b16 %v526, %v524
        %v751 = vpack.c.b16 %v527, %v525
        %v752 = vpack.c.b16 %v530, %v528
        %v753 = vpack.c.b16 %v531, %v529
        %v754 = vpack.c.b16 %v534, %v532
        %v755 = vpack.c.b16 %v535, %v533
        %v756 = vpack.c.b16 %v538, %v536
        %v757 = vpack.c.b16 %v539, %v537
        %v758 = vpack.c.b16 %v542, %v540
        %v759 = vpack.c.b16 %v543, %v541
        %v760 = vpack.c.b16 %v546, %v544
        %v761 = vpack.c.b16 %v547, %v545
        %v762 = vpack.c.b16 %v550, %v548
        %v763 = vpack.c.b16 %v551, %v549
        %v764 = vpack.c.b16 %v554, %v552
        %v765 = vpack.c.b16 %v555, %v553
        %v766 = vpack.c.b16 %v558, %v556
        %v767 = vpack.c.b16 %v559, %v557
        %v768 = vpack.c.b16 %v562, %v560
        %v769 = vpack.c.b16 %v563, %v561
        %v770 = vpack.c.b16 %v566, %v564
        %v771 = vpack.c.b16 %v567, %v565
        %v772 = vpack.c.b16 %v570, %v568
        %v773 = vpack.c.b16 %v571, %v569
        %v774 = vpack.c.b16 %v574, %v572
        %v775 = vpack.c.b16 %v575, %v573
        %v776 = vpack.c.b16 %v578, %v576
        %v777 = vpack.c.b16 %v579, %v577
        %v778 = vpack.c.b16 %v582, %v580
        %v779 = vpack.c.b16 %v583, %v581
        %v780 = vpack.c.b16 %v586, %v584
        %v781 = vpack.c.b16 %v587, %v585
        %v782 = vpack.c.b16 %v590, %v588
        %v783 = vpack.c.b16 %v591, %v589
        %v784 = vpack.c.b16 %v594, %v592
        %v785 = vpack.c.b16 %v595, %v593
        %v786 = vpack.c.b16 %v598, %v596
        %v787 = vpack.c.b16 %v599, %v597
        %v788 = vpack.c.b16 %v602, %v600
        %v789 = vpack.c.b16 %v603, %v601
        %v790 = vpack.c.b16 %v606, %v604
        %v791 = vpack.c.b16 %v607, %v605
        %v792 = vpack.c.b16 %v610, %v608
        %v793 = vpack.c.b16 %v611, %v609
        %v794 = vpack.c.b16 %v614, %v612
        %v795 = vpack.c.b16 %v615, %v613
        %v796 = vpack.c.b16 %v618, %v616
        %v797 = vpack.c.b16 %v619, %v617
        %v798 = vpack.c.b16 %v622, %v620
        %v799 = vpack.c.b16 %v623, %v621
        %v800 = vpack.c.b16 %v626, %v624
        %v801 = vpack.c.b16 %v627, %v625
        %v802 = vpack.c.b16 %v630, %v628
        %v803 = vpack.c.b16 %v631, %v629
        %v804 = vpack.c.b16 %v634, %v632
        %v805 = vpack.c.b16 %v635, %v633
        %v806 = vpack.c.b16 %v638, %v636
        %v807 = vpack.c.b16 %v639, %v637
        %v808 = vpack.c.b16 %v642, %v640
        %v809 = vpack.c.b16 %v643, %v641
        %v810 = vpack.c.b16 %v646, %v644
        %v811 = vpack.c.b16 %v647, %v645
        %v812 = vpack.c.b16 %v650, %v648
        %v813 = vpack.c.b16 %v651, %v649
        %v814 = vpack.c.b16 %v654, %v652
        %v815 = vpack.c.b16 %v655, %v653
        %v816 = vpack.c.b16 %v658, %v656
        %v817 = vpack.c.b16 %v659, %v657
        %v818 = vpack.c.b16 %v662, %v660
        %v819 = vpack.c.b16 %v663, %v661
        %v820 = vpack.c.b16 %v666, %v664
        %v821 = vpack.c.b16 %v667, %v665
        %v822 = vpack.c.b16 %v670, %v668
        %v823 = vpack.c.b16 %v671, %v669
        %v824 = vpack.c.b16 %v674, %v672
        %v825 = vpack.c.b16 %v675, %v673
        %v826 = vpack.c.b16 %v678, %v676
        %v827 = vpack.c.b16 %v679, %v677
        %v828 = vpack.c.b16 %v682, %v680
        %v829 = vpack.c.b16 %v683, %v681
        %v830 = vpack.c.b16 %v686, %v684
        %v831 = vpack.c.b16 %v687, %v685
        %v832 = vpack.c.b16 %v690, %v688
        %v833 = vpack.c.b16 %v691, %v689
        %v834 = vpack.c.b16 %v694, %v692
        %v835 = vpack.c.b16 %v695, %v693
        %v836 = vpack.c.b16 %v698, %v696
        %v837 = vpack.c.b16 %v699, %v697
        %v838 = vpack.c.b16 %v702, %v700
        %v839 = vpack.c.b16 %v703, %v701
        %v840 = vpack.c.b16 %v706, %v704
        %v841 = vpack.c.b16 %v707, %v705
        %v842 = vpack.c.b16 %v710, %v708
        %v843 = vpack.c.b16 %v711, %v709
        %v844 = vpack.c.b16 %v714, %v712
        %v845 = vpack.c.b16 %v715, %v713
        %v846 = vpack.c.b16 %v718, %v716
        %v847 = vpack.c.b16 %v719, %v717
        %v931 = vunpack.c.l.b16 %v317
        %v932 = vunpack.c.l.b16 %v318
        %v933 = vunpack.c.l.b16 %v319
        %v934 = vunpack.c.l.b16 %v320
        %v935 = vunpack.c.l.b16 %v321
        %v936 = vunpack.c.l.b16 %v322
        %v937 = vunpack.c.l.b16 %v323
        %v938 = vunpack.c.l.b16 %v324
        %v939 = vunpack.c.l.b16 %v325
        %v940 = vunpack.c.l.b16 %v326
        %v941 = vunpack.c.l.b16 %v327
        %v942 = vunpack.c.l.b16 %v328
        %v943 = vunpack.c.l.b16 %v329
        %v944 = vunpack.c.l.b16 %v330
        %v945 = vunpack.c.l.b16 %v331
        %v946 = vunpack.c.l.b16 %v332
        %v947 = vunpack.c.l.b16 %v333
        %v948 = vunpack.c.l.b16 %v334
        %v949 = vunpack.c.l.b16 %v335
        %v950 = vpack.c.b16 %v932, %v931
        %v951 = vpack.c.b16 %v934, %v933
        %v952 = vpack.c.b16 %v936, %v935
        %v953 = vpack.c.b16 %v938, %v937
        %v954 = vpack.c.b16 %v940, %v939
        %v955 = vpack.c.b16 %v942, %v941
        %v956 = vpack.c.b16 %v944, %v943
        %v957 = vpack.c.b16 %v946, %v945
        %v958 = vpack.c.b16 %v948, %v947
        %v959 = vpack.c.b16 %v949, %v949
        %vm969 = vcmask 154624
        %v971 = vsel %vm969, %v721, 0
        %v974 = vsel %vm969, %v723, 0
        %v977 = vsel %vm969, %v725, 0
        %v980 = vsel %vm969, %v727, 0
        %v983 = vsel %vm969, %v729, 0
        %v986 = vsel %vm969, %v731, 0
        %v989 = vsel %vm969, %v733, 0
        %v992 = vsel %vm969, %v735, 0
        %v995 = vsel %vm969, %v737, 0
        %v998 = vsel %vm969, %v739, 0
        %v1001 = vsel %vm969, %v741, 0
        %v1004 = vsel %vm969, %v743, 0
        %v1007 = vsel %vm969, %v745, 0
        %v1010 = vsel %vm969, %v747, 0
        %v1013 = vsel %vm969, %v749, 0
        %v1016 = vsel %vm969, %v751, 0
        %v1019 = vsel %vm969, %v753, 0
        %v1022 = vsel %vm969, %v755, 0
        %v1025 = vsel %vm969, %v757, 0
        %v1028 = vsel %vm969, %v759, 0
        %v1031 = vsel %vm969, %v761, 0
        %v1034 = vsel %vm969, %v763, 0
        %v1037 = vsel %vm969, %v765, 0
        %v1040 = vsel %vm969, %v767, 0
        %v1043 = vsel %vm969, %v769, 0
        %v1046 = vsel %vm969, %v771, 0
        %v1049 = vsel %vm969, %v773, 0
        %v1052 = vsel %vm969, %v775, 0
        %v1055 = vsel %vm969, %v777, 0
        %v1058 = vsel %vm969, %v779, 0
        %v1061 = vsel %vm969, %v781, 0
        %v1064 = vsel %vm969, %v783, 0
        %v1067 = vsel %vm969, %v785, 0
        %v1070 = vsel %vm969, %v787, 0
        %v1073 = vsel %vm969, %v789, 0
        %v1076 = vsel %vm969, %v791, 0
        %v1079 = vsel %vm969, %v793, 0
        %v1082 = vsel %vm969, %v795, 0
        %v1085 = vsel %vm969, %v797, 0
        %v1088 = vsel %vm969, %v799, 0
        %v1091 = vsel %vm969, %v801, 0
        %v1094 = vsel %vm969, %v803, 0
        %v1097 = vsel %vm969, %v805, 0
        %v1100 = vsel %vm969, %v807, 0
        %v1103 = vsel %vm969, %v809, 0
        %v1106 = vsel %vm969, %v811, 0
        %v1109 = vsel %vm969, %v813, 0
        %v1112 = vsel %vm969, %v815, 0
        %v1115 = vsel %vm969, %v817, 0
        %v1118 = vsel %vm969, %v819, 0
        %v1121 = vsel %vm969, %v821, 0
        %v1124 = vsel %vm969, %v823, 0
        %v1127 = vsel %vm969, %v825, 0
        %v1130 = vsel %vm969, %v827, 0
        %v1133 = vsel %vm969, %v829, 0
        %v1136 = vsel %vm969, %v831, 0
        %v1139 = vsel %vm969, %v833, 0
        %v1142 = vsel %vm969, %v835, 0
        %v1145 = vsel %vm969, %v837, 0
        %v1148 = vsel %vm969, %v839, 0
        %v1151 = vsel %vm969, %v841, 0
        %v1154 = vsel %vm969, %v843, 0
        %v1157 = vsel %vm969, %v845, 0
        %v1160 = vsel %vm969, %v847, 0
        %vm1162 = vcmask 1040384
        %vm1163 = vcmask 1041408
        %v1164 = vsel %vm1162, 4294967295, 65535
        %v1165 = vsel %vm1163, %v1164, 0
        %v1167 = vand.u32 %v959, %v1165
        %1169 = vmatpush.bf16.msra.mxu0 %v957
        %1170 = vmatpush.bf16.msra.mxu0 %v956
        %1171 = vmatpush.bf16.msra.mxu0 %v955
        %1172 = vmatpush.bf16.msra.mxu0 %v954
        %1173 = vmatpush.bf16.msra.mxu0 %v953
        %1174 = vmatpush.bf16.msra.mxu0 %v952
        %1175 = vmatpush.bf16.msra.mxu0 %v951
        %1176 = vmatpush.bf16.msra.mxu0 %v950
        %1177 = vmatmul.bf16.gmra.mxu0 %v720
        %v1178 = vpop.f32.mrf.mxu0
        %v1179 = vadd.f32 0.0, %v1178
        %v1180 = vpop.f32.mrf.mxu0
        %v1181 = vadd.f32 0.0, %v1180
        %1182 = vmatmul.bf16.gmra.mxu0 %v722
        %v1183 = vpop.f32.mrf.mxu0
        %v1184 = vadd.f32 0.0, %v1183
        %v1185 = vpop.f32.mrf.mxu0
        %v1186 = vadd.f32 0.0, %v1185
        %1187 = vmatmul.bf16.gmra.mxu0 %v724
        %v1188 = vpop.f32.mrf.mxu0
        %v1189 = vadd.f32 0.0, %v1188
        %v1190 = vpop.f32.mrf.mxu0
        %v1191 = vadd.f32 0.0, %v1190
        %1192 = vmatmul.bf16.gmra.mxu0 %v726
        %v1193 = vpop.f32.mrf.mxu0
        %v1194 = vadd.f32 0.0, %v1193
        %v1195 = vpop.f32.mrf.mxu0
        %v1196 = vadd.f32 0.0, %v1195
        %1197 = vmatmul.bf16.gmra.mxu0 %v728
        %v1198 = vpop.f32.mrf.mxu0
        %v1199 = vadd.f32 0.0, %v1198
        %v1200 = vpop.f32.mrf.mxu0
        %v1201 = vadd.f32 0.0, %v1200
        %1202 = vmatmul.bf16.gmra.mxu0 %v730
        %v1203 = vpop.f32.mrf.mxu0
        %v1204 = vadd.f32 0.0, %v1203
        %v1205 = vpop.f32.mrf.mxu0
        %v1206 = vadd.f32 0.0, %v1205
        %1207 = vmatmul.bf16.gmra.mxu0 %v732
        %v1208 = vpop.f32.mrf.mxu0
        %v1209 = vadd.f32 0.0, %v1208
        %v1210 = vpop.f32.mrf.mxu0
        %v1211 = vadd.f32 0.0, %v1210
        %1212 = vmatmul.bf16.gmra.mxu0 %v734
        %v1213 = vpop.f32.mrf.mxu0
        %v1214 = vadd.f32 0.0, %v1213
        %v1215 = vpop.f32.mrf.mxu0
        %v1216 = vadd.f32 0.0, %v1215
        %1217 = vmatmul.bf16.gmra.mxu0 %v736
        %v1218 = vpop.f32.mrf.mxu0
        %v1219 = vadd.f32 0.0, %v1218
        %v1220 = vpop.f32.mrf.mxu0
        %v1221 = vadd.f32 0.0, %v1220
        %1222 = vmatmul.bf16.gmra.mxu0 %v738
        %v1223 = vpop.f32.mrf.mxu0
        %v1224 = vadd.f32 0.0, %v1223
        %v1225 = vpop.f32.mrf.mxu0
        %v1226 = vadd.f32 0.0, %v1225
        %1227 = vmatmul.bf16.gmra.mxu0 %v740
        %v1228 = vpop.f32.mrf.mxu0
        %v1229 = vadd.f32 0.0, %v1228
        %v1230 = vpop.f32.mrf.mxu0
        %v1231 = vadd.f32 0.0, %v1230
        %1232 = vmatmul.bf16.gmra.mxu0 %v742
        %v1233 = vpop.f32.mrf.mxu0
        %v1234 = vadd.f32 0.0, %v1233
        %v1235 = vpop.f32.mrf.mxu0
        %v1236 = vadd.f32 0.0, %v1235
        %1237 = vmatmul.bf16.gmra.mxu0 %v744
        %v1238 = vpop.f32.mrf.mxu0
        %v1239 = vadd.f32 0.0, %v1238
        %v1240 = vpop.f32.mrf.mxu0
        %v1241 = vadd.f32 0.0, %v1240
        %1242 = vmatmul.bf16.gmra.mxu0 %v746
        %v1243 = vpop.f32.mrf.mxu0
        %v1244 = vadd.f32 0.0, %v1243
        %v1245 = vpop.f32.mrf.mxu0
        %v1246 = vadd.f32 0.0, %v1245
        %1247 = vmatmul.bf16.gmra.mxu0 %v748
        %v1248 = vpop.f32.mrf.mxu0
        %v1249 = vadd.f32 0.0, %v1248
        %v1250 = vpop.f32.mrf.mxu0
        %v1251 = vadd.f32 0.0, %v1250
        %1252 = vmatmul.bf16.gmra.mxu0 %v750
        %v1253 = vpop.f32.mrf.mxu0
        %v1254 = vadd.f32 0.0, %v1253
        %v1255 = vpop.f32.mrf.mxu0
        %v1256 = vadd.f32 0.0, %v1255
        %1257 = vmatmul.bf16.gmra.mxu0 %v752
        %v1258 = vpop.f32.mrf.mxu0
        %v1259 = vadd.f32 0.0, %v1258
        %v1260 = vpop.f32.mrf.mxu0
        %v1261 = vadd.f32 0.0, %v1260
        %1262 = vmatmul.bf16.gmra.mxu0 %v754
        %v1263 = vpop.f32.mrf.mxu0
        %v1264 = vadd.f32 0.0, %v1263
        %v1265 = vpop.f32.mrf.mxu0
        %v1266 = vadd.f32 0.0, %v1265
        %1267 = vmatmul.bf16.gmra.mxu0 %v756
        %v1268 = vpop.f32.mrf.mxu0
        %v1269 = vadd.f32 0.0, %v1268
        %v1270 = vpop.f32.mrf.mxu0
        %v1271 = vadd.f32 0.0, %v1270
        %1272 = vmatmul.bf16.gmra.mxu0 %v758
        %v1273 = vpop.f32.mrf.mxu0
        %v1274 = vadd.f32 0.0, %v1273
        %v1275 = vpop.f32.mrf.mxu0
        %v1276 = vadd.f32 0.0, %v1275
        %1277 = vmatmul.bf16.gmra.mxu0 %v760
        %v1278 = vpop.f32.mrf.mxu0
        %v1279 = vadd.f32 0.0, %v1278
        %v1280 = vpop.f32.mrf.mxu0
        %v1281 = vadd.f32 0.0, %v1280
        %1282 = vmatmul.bf16.gmra.mxu0 %v762
        %v1283 = vpop.f32.mrf.mxu0
        %v1284 = vadd.f32 0.0, %v1283
        %v1285 = vpop.f32.mrf.mxu0
        %v1286 = vadd.f32 0.0, %v1285
        %1287 = vmatmul.bf16.gmra.mxu0 %v764
        %v1288 = vpop.f32.mrf.mxu0
        %v1289 = vadd.f32 0.0, %v1288
        %v1290 = vpop.f32.mrf.mxu0
        %v1291 = vadd.f32 0.0, %v1290
        %1292 = vmatmul.bf16.gmra.mxu0 %v766
        %v1293 = vpop.f32.mrf.mxu0
        %v1294 = vadd.f32 0.0, %v1293
        %v1295 = vpop.f32.mrf.mxu0
        %v1296 = vadd.f32 0.0, %v1295
        %1297 = vmatmul.bf16.gmra.mxu0 %v768
        %v1298 = vpop.f32.mrf.mxu0
        %v1299 = vadd.f32 0.0, %v1298
        %v1300 = vpop.f32.mrf.mxu0
        %v1301 = vadd.f32 0.0, %v1300
        %1302 = vmatmul.bf16.gmra.mxu0 %v770
        %v1303 = vpop.f32.mrf.mxu0
        %v1304 = vadd.f32 0.0, %v1303
        %v1305 = vpop.f32.mrf.mxu0
        %v1306 = vadd.f32 0.0, %v1305
        %1307 = vmatmul.bf16.gmra.mxu0 %v772
        %v1308 = vpop.f32.mrf.mxu0
        %v1309 = vadd.f32 0.0, %v1308
        %v1310 = vpop.f32.mrf.mxu0
        %v1311 = vadd.f32 0.0, %v1310
        %1312 = vmatmul.bf16.gmra.mxu0 %v774
        %v1313 = vpop.f32.mrf.mxu0
        %v1314 = vadd.f32 0.0, %v1313
        %v1315 = vpop.f32.mrf.mxu0
        %v1316 = vadd.f32 0.0, %v1315
        %1317 = vmatmul.bf16.gmra.mxu0 %v776
        %v1318 = vpop.f32.mrf.mxu0
        %v1319 = vadd.f32 0.0, %v1318
        %v1320 = vpop.f32.mrf.mxu0
        %v1321 = vadd.f32 0.0, %v1320
        %1322 = vmatmul.bf16.gmra.mxu0 %v778
        %v1323 = vpop.f32.mrf.mxu0
        %v1324 = vadd.f32 0.0, %v1323
        %v1325 = vpop.f32.mrf.mxu0
        %v1326 = vadd.f32 0.0, %v1325
        %1327 = vmatmul.bf16.gmra.mxu0 %v780
        %v1328 = vpop.f32.mrf.mxu0
        %v1329 = vadd.f32 0.0, %v1328
        %v1330 = vpop.f32.mrf.mxu0
        %v1331 = vadd.f32 0.0, %v1330
        %1332 = vmatmul.bf16.gmra.mxu0 %v782
        %v1333 = vpop.f32.mrf.mxu0
        %v1334 = vadd.f32 0.0, %v1333
        %v1335 = vpop.f32.mrf.mxu0
        %v1336 = vadd.f32 0.0, %v1335
        %1337 = vmatmul.bf16.gmra.mxu0 %v784
        %v1338 = vpop.f32.mrf.mxu0
        %v1339 = vadd.f32 0.0, %v1338
        %v1340 = vpop.f32.mrf.mxu0
        %v1341 = vadd.f32 0.0, %v1340
        %1342 = vmatmul.bf16.gmra.mxu0 %v786
        %v1343 = vpop.f32.mrf.mxu0
        %v1344 = vadd.f32 0.0, %v1343
        %v1345 = vpop.f32.mrf.mxu0
        %v1346 = vadd.f32 0.0, %v1345
        %1347 = vmatmul.bf16.gmra.mxu0 %v788
        %v1348 = vpop.f32.mrf.mxu0
        %v1349 = vadd.f32 0.0, %v1348
        %v1350 = vpop.f32.mrf.mxu0
        %v1351 = vadd.f32 0.0, %v1350
        %1352 = vmatmul.bf16.gmra.mxu0 %v790
        %v1353 = vpop.f32.mrf.mxu0
        %v1354 = vadd.f32 0.0, %v1353
        %v1355 = vpop.f32.mrf.mxu0
        %v1356 = vadd.f32 0.0, %v1355
        %1357 = vmatmul.bf16.gmra.mxu0 %v792
        %v1358 = vpop.f32.mrf.mxu0
        %v1359 = vadd.f32 0.0, %v1358
        %v1360 = vpop.f32.mrf.mxu0
        %v1361 = vadd.f32 0.0, %v1360
        %1362 = vmatmul.bf16.gmra.mxu0 %v794
        %v1363 = vpop.f32.mrf.mxu0
        %v1364 = vadd.f32 0.0, %v1363
        %v1365 = vpop.f32.mrf.mxu0
        %v1366 = vadd.f32 0.0, %v1365
        %1367 = vmatmul.bf16.gmra.mxu0 %v796
        %v1368 = vpop.f32.mrf.mxu0
        %v1369 = vadd.f32 0.0, %v1368
        %v1370 = vpop.f32.mrf.mxu0
        %v1371 = vadd.f32 0.0, %v1370
        %1372 = vmatmul.bf16.gmra.mxu0 %v798
        %v1373 = vpop.f32.mrf.mxu0
        %v1374 = vadd.f32 0.0, %v1373
        %v1375 = vpop.f32.mrf.mxu0
        %v1376 = vadd.f32 0.0, %v1375
        %1377 = vmatmul.bf16.gmra.mxu0 %v800
        %v1378 = vpop.f32.mrf.mxu0
        %v1379 = vadd.f32 0.0, %v1378
        %v1380 = vpop.f32.mrf.mxu0
        %v1381 = vadd.f32 0.0, %v1380
        %1382 = vmatmul.bf16.gmra.mxu0 %v802
        %v1383 = vpop.f32.mrf.mxu0
        %v1384 = vadd.f32 0.0, %v1383
        %v1385 = vpop.f32.mrf.mxu0
        %v1386 = vadd.f32 0.0, %v1385
        %1387 = vmatmul.bf16.gmra.mxu0 %v804
        %v1388 = vpop.f32.mrf.mxu0
        %v1389 = vadd.f32 0.0, %v1388
        %v1390 = vpop.f32.mrf.mxu0
        %v1391 = vadd.f32 0.0, %v1390
        %1392 = vmatmul.bf16.gmra.mxu0 %v806
        %v1393 = vpop.f32.mrf.mxu0
        %v1394 = vadd.f32 0.0, %v1393
        %v1395 = vpop.f32.mrf.mxu0
        %v1396 = vadd.f32 0.0, %v1395
        %1397 = vmatmul.bf16.gmra.mxu0 %v808
        %v1398 = vpop.f32.mrf.mxu0
        %v1399 = vadd.f32 0.0, %v1398
        %v1400 = vpop.f32.mrf.mxu0
        %v1401 = vadd.f32 0.0, %v1400
        %1402 = vmatmul.bf16.gmra.mxu0 %v810
        %v1403 = vpop.f32.mrf.mxu0
        %v1404 = vadd.f32 0.0, %v1403
        %v1405 = vpop.f32.mrf.mxu0
        %v1406 = vadd.f32 0.0, %v1405
        %1407 = vmatmul.bf16.gmra.mxu0 %v812
        %v1408 = vpop.f32.mrf.mxu0
        %v1409 = vadd.f32 0.0, %v1408
        %v1410 = vpop.f32.mrf.mxu0
        %v1411 = vadd.f32 0.0, %v1410
        %1412 = vmatmul.bf16.gmra.mxu0 %v814
        %v1413 = vpop.f32.mrf.mxu0
        %v1414 = vadd.f32 0.0, %v1413
        %v1415 = vpop.f32.mrf.mxu0
        %v1416 = vadd.f32 0.0, %v1415
        %1417 = vmatmul.bf16.gmra.mxu0 %v816
        %v1418 = vpop.f32.mrf.mxu0
        %v1419 = vadd.f32 0.0, %v1418
        %v1420 = vpop.f32.mrf.mxu0
        %v1421 = vadd.f32 0.0, %v1420
        %1422 = vmatmul.bf16.gmra.mxu0 %v818
        %v1423 = vpop.f32.mrf.mxu0
        %v1424 = vadd.f32 0.0, %v1423
        %v1425 = vpop.f32.mrf.mxu0
        %v1426 = vadd.f32 0.0, %v1425
        %1427 = vmatmul.bf16.gmra.mxu0 %v820
        %v1428 = vpop.f32.mrf.mxu0
        %v1429 = vadd.f32 0.0, %v1428
        %v1430 = vpop.f32.mrf.mxu0
        %v1431 = vadd.f32 0.0, %v1430
        %1432 = vmatmul.bf16.gmra.mxu0 %v822
        %v1433 = vpop.f32.mrf.mxu0
        %v1434 = vadd.f32 0.0, %v1433
        %v1435 = vpop.f32.mrf.mxu0
        %v1436 = vadd.f32 0.0, %v1435
        %1437 = vmatmul.bf16.gmra.mxu0 %v824
        %v1438 = vpop.f32.mrf.mxu0
        %v1439 = vadd.f32 0.0, %v1438
        %v1440 = vpop.f32.mrf.mxu0
        %v1441 = vadd.f32 0.0, %v1440
        %1442 = vmatmul.bf16.gmra.mxu0 %v826
        %v1443 = vpop.f32.mrf.mxu0
        %v1444 = vadd.f32 0.0, %v1443
        %v1445 = vpop.f32.mrf.mxu0
        %v1446 = vadd.f32 0.0, %v1445
        %1447 = vmatmul.bf16.gmra.mxu0 %v828
        %v1448 = vpop.f32.mrf.mxu0
        %v1449 = vadd.f32 0.0, %v1448
        %v1450 = vpop.f32.mrf.mxu0
        %v1451 = vadd.f32 0.0, %v1450
        %1452 = vmatmul.bf16.gmra.mxu0 %v830
        %v1453 = vpop.f32.mrf.mxu0
        %v1454 = vadd.f32 0.0, %v1453
        %v1455 = vpop.f32.mrf.mxu0
        %v1456 = vadd.f32 0.0, %v1455
        %1457 = vmatmul.bf16.gmra.mxu0 %v832
        %v1458 = vpop.f32.mrf.mxu0
        %v1459 = vadd.f32 0.0, %v1458
        %v1460 = vpop.f32.mrf.mxu0
        %v1461 = vadd.f32 0.0, %v1460
        %1462 = vmatmul.bf16.gmra.mxu0 %v834
        %v1463 = vpop.f32.mrf.mxu0
        %v1464 = vadd.f32 0.0, %v1463
        %v1465 = vpop.f32.mrf.mxu0
        %v1466 = vadd.f32 0.0, %v1465
        %1467 = vmatmul.bf16.gmra.mxu0 %v836
        %v1468 = vpop.f32.mrf.mxu0
        %v1469 = vadd.f32 0.0, %v1468
        %v1470 = vpop.f32.mrf.mxu0
        %v1471 = vadd.f32 0.0, %v1470
        %1472 = vmatmul.bf16.gmra.mxu0 %v838
        %v1473 = vpop.f32.mrf.mxu0
        %v1474 = vadd.f32 0.0, %v1473
        %v1475 = vpop.f32.mrf.mxu0
        %v1476 = vadd.f32 0.0, %v1475
        %1477 = vmatmul.bf16.gmra.mxu0 %v840
        %v1478 = vpop.f32.mrf.mxu0
        %v1479 = vadd.f32 0.0, %v1478
        %v1480 = vpop.f32.mrf.mxu0
        %v1481 = vadd.f32 0.0, %v1480
        %1482 = vmatmul.bf16.gmra.mxu0 %v842
        %v1483 = vpop.f32.mrf.mxu0
        %v1484 = vadd.f32 0.0, %v1483
        %v1485 = vpop.f32.mrf.mxu0
        %v1486 = vadd.f32 0.0, %v1485
        %1487 = vmatmul.bf16.gmra.mxu0 %v844
        %v1488 = vpop.f32.mrf.mxu0
        %v1489 = vadd.f32 0.0, %v1488
        %v1490 = vpop.f32.mrf.mxu0
        %v1491 = vadd.f32 0.0, %v1490
        %1492 = vmatmul.bf16.gmra.mxu0 %v846
        %v1493 = vpop.f32.mrf.mxu0
        %v1494 = vadd.f32 0.0, %v1493
        %v1495 = vpop.f32.mrf.mxu0
        %v1496 = vadd.f32 0.0, %v1495
        %1497 = vdwg.mxu0
        %1498 = vmatpush.bf16.msra.mxu0 0
        %1499 = vmatpush.bf16.msra.mxu0 0
        %1500 = vmatpush.bf16.msra.mxu0 0
        %1501 = vmatpush.bf16.msra.mxu0 0
        %1502 = vmatpush.bf16.msra.mxu0 0
        %1503 = vmatpush.bf16.msra.mxu0 0
        %1504 = vmatpush.bf16.msra.mxu0 %v1167
        %1505 = vmatpush.bf16.msra.mxu0 %v958
        %1506 = vmatmul.bf16.gmra.mxu0 %v971
        %v1507 = vpop.f32.mrf.mxu0
        %v1508 = vadd.f32 %v1179, %v1507
        %v1509 = vpop.f32.mrf.mxu0
        %v1510 = vadd.f32 %v1181, %v1509
        %1511 = vmatmul.bf16.gmra.mxu0 %v974
        %v1512 = vpop.f32.mrf.mxu0
        %v1513 = vadd.f32 %v1184, %v1512
        %v1514 = vpop.f32.mrf.mxu0
        %v1515 = vadd.f32 %v1186, %v1514
        %1516 = vmatmul.bf16.gmra.mxu0 %v977
        %v1517 = vpop.f32.mrf.mxu0
        %v1518 = vadd.f32 %v1189, %v1517
        %v1519 = vpop.f32.mrf.mxu0
        %v1520 = vadd.f32 %v1191, %v1519
        %1521 = vmatmul.bf16.gmra.mxu0 %v980
        %v1522 = vpop.f32.mrf.mxu0
        %v1523 = vadd.f32 %v1194, %v1522
        %v1524 = vpop.f32.mrf.mxu0
        %v1525 = vadd.f32 %v1196, %v1524
        %1526 = vmatmul.bf16.gmra.mxu0 %v983
        %v1527 = vpop.f32.mrf.mxu0
        %v1528 = vadd.f32 %v1199, %v1527
        %v1529 = vpop.f32.mrf.mxu0
        %v1530 = vadd.f32 %v1201, %v1529
        %1531 = vmatmul.bf16.gmra.mxu0 %v986
        %v1532 = vpop.f32.mrf.mxu0
        %v1533 = vadd.f32 %v1204, %v1532
        %v1534 = vpop.f32.mrf.mxu0
        %v1535 = vadd.f32 %v1206, %v1534
        %1536 = vmatmul.bf16.gmra.mxu0 %v989
        %v1537 = vpop.f32.mrf.mxu0
        %v1538 = vadd.f32 %v1209, %v1537
        %v1539 = vpop.f32.mrf.mxu0
        %v1540 = vadd.f32 %v1211, %v1539
        %1541 = vmatmul.bf16.gmra.mxu0 %v992
        %v1542 = vpop.f32.mrf.mxu0
        %v1543 = vadd.f32 %v1214, %v1542
        %v1544 = vpop.f32.mrf.mxu0
        %v1545 = vadd.f32 %v1216, %v1544
        %1546 = vmatmul.bf16.gmra.mxu0 %v995
        %v1547 = vpop.f32.mrf.mxu0
        %v1548 = vadd.f32 %v1219, %v1547
        %v1549 = vpop.f32.mrf.mxu0
        %v1550 = vadd.f32 %v1221, %v1549
        %1551 = vmatmul.bf16.gmra.mxu0 %v998
        %v1552 = vpop.f32.mrf.mxu0
        %v1553 = vadd.f32 %v1224, %v1552
        %v1554 = vpop.f32.mrf.mxu0
        %v1555 = vadd.f32 %v1226, %v1554
        %1556 = vmatmul.bf16.gmra.mxu0 %v1001
        %v1557 = vpop.f32.mrf.mxu0
        %v1558 = vadd.f32 %v1229, %v1557
        %v1559 = vpop.f32.mrf.mxu0
        %v1560 = vadd.f32 %v1231, %v1559
        %1561 = vmatmul.bf16.gmra.mxu0 %v1004
        %v1562 = vpop.f32.mrf.mxu0
        %v1563 = vadd.f32 %v1234, %v1562
        %v1564 = vpop.f32.mrf.mxu0
        %v1565 = vadd.f32 %v1236, %v1564
        %1566 = vmatmul.bf16.gmra.mxu0 %v1007
        %v1567 = vpop.f32.mrf.mxu0
        %v1568 = vadd.f32 %v1239, %v1567
        %v1569 = vpop.f32.mrf.mxu0
        %v1570 = vadd.f32 %v1241, %v1569
        %1571 = vmatmul.bf16.gmra.mxu0 %v1010
        %v1572 = vpop.f32.mrf.mxu0
        %v1573 = vadd.f32 %v1244, %v1572
        %v1574 = vpop.f32.mrf.mxu0
        %v1575 = vadd.f32 %v1246, %v1574
        %1576 = vmatmul.bf16.gmra.mxu0 %v1013
        %v1577 = vpop.f32.mrf.mxu0
        %v1578 = vadd.f32 %v1249, %v1577
        %v1579 = vpop.f32.mrf.mxu0
        %v1580 = vadd.f32 %v1251, %v1579
        %1581 = vmatmul.bf16.gmra.mxu0 %v1016
        %v1582 = vpop.f32.mrf.mxu0
        %v1583 = vadd.f32 %v1254, %v1582
        %v1584 = vpop.f32.mrf.mxu0
        %v1585 = vadd.f32 %v1256, %v1584
        %1586 = vmatmul.bf16.gmra.mxu0 %v1019
        %v1587 = vpop.f32.mrf.mxu0
        %v1588 = vadd.f32 %v1259, %v1587
        %v1589 = vpop.f32.mrf.mxu0
        %v1590 = vadd.f32 %v1261, %v1589
        %1591 = vmatmul.bf16.gmra.mxu0 %v1022
        %v1592 = vpop.f32.mrf.mxu0
        %v1593 = vadd.f32 %v1264, %v1592
        %v1594 = vpop.f32.mrf.mxu0
        %v1595 = vadd.f32 %v1266, %v1594
        %1596 = vmatmul.bf16.gmra.mxu0 %v1025
        %v1597 = vpop.f32.mrf.mxu0
        %v1598 = vadd.f32 %v1269, %v1597
        %v1599 = vpop.f32.mrf.mxu0
        %v1600 = vadd.f32 %v1271, %v1599
        %1601 = vmatmul.bf16.gmra.mxu0 %v1028
        %v1602 = vpop.f32.mrf.mxu0
        %v1603 = vadd.f32 %v1274, %v1602
        %v1604 = vpop.f32.mrf.mxu0
        %v1605 = vadd.f32 %v1276, %v1604
        %1606 = vmatmul.bf16.gmra.mxu0 %v1031
        %v1607 = vpop.f32.mrf.mxu0
        %v1608 = vadd.f32 %v1279, %v1607
        %v1609 = vpop.f32.mrf.mxu0
        %v1610 = vadd.f32 %v1281, %v1609
        %1611 = vmatmul.bf16.gmra.mxu0 %v1034
        %v1612 = vpop.f32.mrf.mxu0
        %v1613 = vadd.f32 %v1284, %v1612
        %v1614 = vpop.f32.mrf.mxu0
        %v1615 = vadd.f32 %v1286, %v1614
        %1616 = vmatmul.bf16.gmra.mxu0 %v1037
        %v1617 = vpop.f32.mrf.mxu0
        %v1618 = vadd.f32 %v1289, %v1617
        %v1619 = vpop.f32.mrf.mxu0
        %v1620 = vadd.f32 %v1291, %v1619
        %1621 = vmatmul.bf16.gmra.mxu0 %v1040
        %v1622 = vpop.f32.mrf.mxu0
        %v1623 = vadd.f32 %v1294, %v1622
        %v1624 = vpop.f32.mrf.mxu0
        %v1625 = vadd.f32 %v1296, %v1624
        %1626 = vmatmul.bf16.gmra.mxu0 %v1043
        %v1627 = vpop.f32.mrf.mxu0
        %v1628 = vadd.f32 %v1299, %v1627
        %v1629 = vpop.f32.mrf.mxu0
        %v1630 = vadd.f32 %v1301, %v1629
        %1631 = vmatmul.bf16.gmra.mxu0 %v1046
        %v1632 = vpop.f32.mrf.mxu0
        %v1633 = vadd.f32 %v1304, %v1632
        %v1634 = vpop.f32.mrf.mxu0
        %v1635 = vadd.f32 %v1306, %v1634
        %1636 = vmatmul.bf16.gmra.mxu0 %v1049
        %v1637 = vpop.f32.mrf.mxu0
        %v1638 = vadd.f32 %v1309, %v1637
        %v1639 = vpop.f32.mrf.mxu0
        %v1640 = vadd.f32 %v1311, %v1639
        %1641 = vmatmul.bf16.gmra.mxu0 %v1052
        %v1642 = vpop.f32.mrf.mxu0
        %v1643 = vadd.f32 %v1314, %v1642
        %v1644 = vpop.f32.mrf.mxu0
        %v1645 = vadd.f32 %v1316, %v1644
        %1646 = vmatmul.bf16.gmra.mxu0 %v1055
        %v1647 = vpop.f32.mrf.mxu0
        %v1648 = vadd.f32 %v1319, %v1647
        %v1649 = vpop.f32.mrf.mxu0
        %v1650 = vadd.f32 %v1321, %v1649
        %1651 = vmatmul.bf16.gmra.mxu0 %v1058
        %v1652 = vpop.f32.mrf.mxu0
        %v1653 = vadd.f32 %v1324, %v1652
        %v1654 = vpop.f32.mrf.mxu0
        %v1655 = vadd.f32 %v1326, %v1654
        %1656 = vmatmul.bf16.gmra.mxu0 %v1061
        %v1657 = vpop.f32.mrf.mxu0
        %v1658 = vadd.f32 %v1329, %v1657
        %v1659 = vpop.f32.mrf.mxu0
        %v1660 = vadd.f32 %v1331, %v1659
        %1661 = vmatmul.bf16.gmra.mxu0 %v1064
        %v1662 = vpop.f32.mrf.mxu0
        %v1663 = vadd.f32 %v1334, %v1662
        %v1664 = vpop.f32.mrf.mxu0
        %v1665 = vadd.f32 %v1336, %v1664
        %1666 = vmatmul.bf16.gmra.mxu0 %v1067
        %v1667 = vpop.f32.mrf.mxu0
        %v1668 = vadd.f32 %v1339, %v1667
        %v1669 = vpop.f32.mrf.mxu0
        %v1670 = vadd.f32 %v1341, %v1669
        %1671 = vmatmul.bf16.gmra.mxu0 %v1070
        %v1672 = vpop.f32.mrf.mxu0
        %v1673 = vadd.f32 %v1344, %v1672
        %v1674 = vpop.f32.mrf.mxu0
        %v1675 = vadd.f32 %v1346, %v1674
        %1676 = vmatmul.bf16.gmra.mxu0 %v1073
        %v1677 = vpop.f32.mrf.mxu0
        %v1678 = vadd.f32 %v1349, %v1677
        %v1679 = vpop.f32.mrf.mxu0
        %v1680 = vadd.f32 %v1351, %v1679
        %1681 = vmatmul.bf16.gmra.mxu0 %v1076
        %v1682 = vpop.f32.mrf.mxu0
        %v1683 = vadd.f32 %v1354, %v1682
        %v1684 = vpop.f32.mrf.mxu0
        %v1685 = vadd.f32 %v1356, %v1684
        %1686 = vmatmul.bf16.gmra.mxu0 %v1079
        %v1687 = vpop.f32.mrf.mxu0
        %v1688 = vadd.f32 %v1359, %v1687
        %v1689 = vpop.f32.mrf.mxu0
        %v1690 = vadd.f32 %v1361, %v1689
        %1691 = vmatmul.bf16.gmra.mxu0 %v1082
        %v1692 = vpop.f32.mrf.mxu0
        %v1693 = vadd.f32 %v1364, %v1692
        %v1694 = vpop.f32.mrf.mxu0
        %v1695 = vadd.f32 %v1366, %v1694
        %1696 = vmatmul.bf16.gmra.mxu0 %v1085
        %v1697 = vpop.f32.mrf.mxu0
        %v1698 = vadd.f32 %v1369, %v1697
        %v1699 = vpop.f32.mrf.mxu0
        %v1700 = vadd.f32 %v1371, %v1699
        %1701 = vmatmul.bf16.gmra.mxu0 %v1088
        %v1702 = vpop.f32.mrf.mxu0
        %v1703 = vadd.f32 %v1374, %v1702
        %v1704 = vpop.f32.mrf.mxu0
        %v1705 = vadd.f32 %v1376, %v1704
        %1706 = vmatmul.bf16.gmra.mxu0 %v1091
        %v1707 = vpop.f32.mrf.mxu0
        %v1708 = vadd.f32 %v1379, %v1707
        %v1709 = vpop.f32.mrf.mxu0
        %v1710 = vadd.f32 %v1381, %v1709
        %1711 = vmatmul.bf16.gmra.mxu0 %v1094
        %v1712 = vpop.f32.mrf.mxu0
        %v1713 = vadd.f32 %v1384, %v1712
        %v1714 = vpop.f32.mrf.mxu0
        %v1715 = vadd.f32 %v1386, %v1714
        %1716 = vmatmul.bf16.gmra.mxu0 %v1097
        %v1717 = vpop.f32.mrf.mxu0
        %v1718 = vadd.f32 %v1389, %v1717
        %v1719 = vpop.f32.mrf.mxu0
        %v1720 = vadd.f32 %v1391, %v1719
        %1721 = vmatmul.bf16.gmra.mxu0 %v1100
        %v1722 = vpop.f32.mrf.mxu0
        %v1723 = vadd.f32 %v1394, %v1722
        %v1724 = vpop.f32.mrf.mxu0
        %v1725 = vadd.f32 %v1396, %v1724
        %1726 = vmatmul.bf16.gmra.mxu0 %v1103
        %v1727 = vpop.f32.mrf.mxu0
        %v1728 = vadd.f32 %v1399, %v1727
        %v1729 = vpop.f32.mrf.mxu0
        %v1730 = vadd.f32 %v1401, %v1729
        %1731 = vmatmul.bf16.gmra.mxu0 %v1106
        %v1732 = vpop.f32.mrf.mxu0
        %v1733 = vadd.f32 %v1404, %v1732
        %v1734 = vpop.f32.mrf.mxu0
        %v1735 = vadd.f32 %v1406, %v1734
        %1736 = vmatmul.bf16.gmra.mxu0 %v1109
        %v1737 = vpop.f32.mrf.mxu0
        %v1738 = vadd.f32 %v1409, %v1737
        %v1739 = vpop.f32.mrf.mxu0
        %v1740 = vadd.f32 %v1411, %v1739
        %1741 = vmatmul.bf16.gmra.mxu0 %v1112
        %v1742 = vpop.f32.mrf.mxu0
        %v1743 = vadd.f32 %v1414, %v1742
        %v1744 = vpop.f32.mrf.mxu0
        %v1745 = vadd.f32 %v1416, %v1744
        %1746 = vmatmul.bf16.gmra.mxu0 %v1115
        %v1747 = vpop.f32.mrf.mxu0
        %v1748 = vadd.f32 %v1419, %v1747
        %v1749 = vpop.f32.mrf.mxu0
        %v1750 = vadd.f32 %v1421, %v1749
        %1751 = vmatmul.bf16.gmra.mxu0 %v1118
        %v1752 = vpop.f32.mrf.mxu0
        %v1753 = vadd.f32 %v1424, %v1752
        %v1754 = vpop.f32.mrf.mxu0
        %v1755 = vadd.f32 %v1426, %v1754
        %1756 = vmatmul.bf16.gmra.mxu0 %v1121
        %v1757 = vpop.f32.mrf.mxu0
        %v1758 = vadd.f32 %v1429, %v1757
        %v1759 = vpop.f32.mrf.mxu0
        %v1760 = vadd.f32 %v1431, %v1759
        %1761 = vmatmul.bf16.gmra.mxu0 %v1124
        %v1762 = vpop.f32.mrf.mxu0
        %v1763 = vadd.f32 %v1434, %v1762
        %v1764 = vpop.f32.mrf.mxu0
        %v1765 = vadd.f32 %v1436, %v1764
        %1766 = vmatmul.bf16.gmra.mxu0 %v1127
        %v1767 = vpop.f32.mrf.mxu0
        %v1768 = vadd.f32 %v1439, %v1767
        %v1769 = vpop.f32.mrf.mxu0
        %v1770 = vadd.f32 %v1441, %v1769
        %1771 = vmatmul.bf16.gmra.mxu0 %v1130
        %v1772 = vpop.f32.mrf.mxu0
        %v1773 = vadd.f32 %v1444, %v1772
        %v1774 = vpop.f32.mrf.mxu0
        %v1775 = vadd.f32 %v1446, %v1774
        %1776 = vmatmul.bf16.gmra.mxu0 %v1133
        %v1777 = vpop.f32.mrf.mxu0
        %v1778 = vadd.f32 %v1449, %v1777
        %v1779 = vpop.f32.mrf.mxu0
        %v1780 = vadd.f32 %v1451, %v1779
        %1781 = vmatmul.bf16.gmra.mxu0 %v1136
        %v1782 = vpop.f32.mrf.mxu0
        %v1783 = vadd.f32 %v1454, %v1782
        %v1784 = vpop.f32.mrf.mxu0
        %v1785 = vadd.f32 %v1456, %v1784
        %1786 = vmatmul.bf16.gmra.mxu0 %v1139
        %v1787 = vpop.f32.mrf.mxu0
        %v1788 = vadd.f32 %v1459, %v1787
        %v1789 = vpop.f32.mrf.mxu0
        %v1790 = vadd.f32 %v1461, %v1789
        %1791 = vmatmul.bf16.gmra.mxu0 %v1142
        %v1792 = vpop.f32.mrf.mxu0
        %v1793 = vadd.f32 %v1464, %v1792
        %v1794 = vpop.f32.mrf.mxu0
        %v1795 = vadd.f32 %v1466, %v1794
        %1796 = vmatmul.bf16.gmra.mxu0 %v1145
        %v1797 = vpop.f32.mrf.mxu0
        %v1798 = vadd.f32 %v1469, %v1797
        %v1799 = vpop.f32.mrf.mxu0
        %v1800 = vadd.f32 %v1471, %v1799
        %1801 = vmatmul.bf16.gmra.mxu0 %v1148
        %v1802 = vpop.f32.mrf.mxu0
        %v1803 = vadd.f32 %v1474, %v1802
        %v1804 = vpop.f32.mrf.mxu0
        %v1805 = vadd.f32 %v1476, %v1804
        %1806 = vmatmul.bf16.gmra.mxu0 %v1151
        %v1807 = vpop.f32.mrf.mxu0
        %v1808 = vadd.f32 %v1479, %v1807
        %v1809 = vpop.f32.mrf.mxu0
        %v1810 = vadd.f32 %v1481, %v1809
        %1811 = vmatmul.bf16.gmra.mxu0 %v1154
        %v1812 = vpop.f32.mrf.mxu0
        %v1813 = vadd.f32 %v1484, %v1812
        %v1814 = vpop.f32.mrf.mxu0
        %v1815 = vadd.f32 %v1486, %v1814
        %1816 = vmatmul.bf16.gmra.mxu0 %v1157
        %v1817 = vpop.f32.mrf.mxu0
        %v1818 = vadd.f32 %v1489, %v1817
        %v1819 = vpop.f32.mrf.mxu0
        %v1820 = vadd.f32 %v1491, %v1819
        %1821 = vmatmul.bf16.gmra.mxu0 %v1160
        %v1822 = vpop.f32.mrf.mxu0
        %v1823 = vadd.f32 %v1494, %v1822
        %v1824 = vpop.f32.mrf.mxu0
        %v1825 = vadd.f32 %v1496, %v1824
        %1826 = vdwg.mxu0
        %vm1827 = vcmask 523264
        %1828 = vst.msk [vmem:[%s186] sm:$0xff] %vm1827, %v1508
        %1829 = vst.msk [vmem:[%s186 + $0x8] sm:$0xff] %vm1827, %v1510
        %1830 = vst.msk [vmem:[%s186 + $0x10] sm:$0xff] %vm1827, %v1513
        %1831 = vst.msk [vmem:[%s186 + $0x18] sm:$0xff] %vm1827, %v1515
        %1832 = vst.msk [vmem:[%s186 + $0x20] sm:$0xff] %vm1827, %v1518
        %1833 = vst.msk [vmem:[%s186 + $0x28] sm:$0xff] %vm1827, %v1520
        %1834 = vst.msk [vmem:[%s186 + $0x30] sm:$0xff] %vm1827, %v1523
        %1835 = vst.msk [vmem:[%s186 + $0x38] sm:$0xff] %vm1827, %v1525
        %1836 = vst.msk [vmem:[%s186 + $0x40] sm:$0xff] %vm1827, %v1528
        %1837 = vst.msk [vmem:[%s186 + $0x48] sm:$0xff] %vm1827, %v1530
        %1838 = vst.msk [vmem:[%s186 + $0x50] sm:$0xff] %vm1827, %v1533
        %1839 = vst.msk [vmem:[%s186 + $0x58] sm:$0xff] %vm1827, %v1535
        %1840 = vst.msk [vmem:[%s186 + $0x60] sm:$0xff] %vm1827, %v1538
        %1841 = vst.msk [vmem:[%s186 + $0x68] sm:$0xff] %vm1827, %v1540
        %1842 = vst.msk [vmem:[%s186 + $0x70] sm:$0xff] %vm1827, %v1543
        %1843 = vst.msk [vmem:[%s186 + $0x78] sm:$0xff] %vm1827, %v1545
        %1844 = vst.msk [vmem:[%s186 + $0x80] sm:$0xff] %vm1827, %v1548
        %1845 = vst.msk [vmem:[%s186 + $0x88] sm:$0xff] %vm1827, %v1550
        %1846 = vst.msk [vmem:[%s186 + $0x90] sm:$0xff] %vm1827, %v1553
        %1847 = vst.msk [vmem:[%s186 + $0x98] sm:$0xff] %vm1827, %v1555
        %1848 = vst.msk [vmem:[%s186 + $0xa0] sm:$0xff] %vm1827, %v1558
        %1849 = vst.msk [vmem:[%s186 + $0xa8] sm:$0xff] %vm1827, %v1560
        %1850 = vst.msk [vmem:[%s186 + $0xb0] sm:$0xff] %vm1827, %v1563
        %1851 = vst.msk [vmem:[%s186 + $0xb8] sm:$0xff] %vm1827, %v1565
        %1852 = vst.msk [vmem:[%s186 + $0xc0] sm:$0xff] %vm1827, %v1568
        %1853 = vst.msk [vmem:[%s186 + $0xc8] sm:$0xff] %vm1827, %v1570
        %1854 = vst.msk [vmem:[%s186 + $0xd0] sm:$0xff] %vm1827, %v1573
        %1855 = vst.msk [vmem:[%s186 + $0xd8] sm:$0xff] %vm1827, %v1575
        %1856 = vst.msk [vmem:[%s186 + $0xe0] sm:$0xff] %vm1827, %v1578
        %1857 = vst.msk [vmem:[%s186 + $0xe8] sm:$0xff] %vm1827, %v1580
        %1858 = vst.msk [vmem:[%s186 + $0xf0] sm:$0xff] %vm1827, %v1583
        %1859 = vst.msk [vmem:[%s186 + $0xf8] sm:$0xff] %vm1827, %v1585
        %1860 = vst.msk [vmem:[%s186 + $0x100] sm:$0xff] %vm1827, %v1588
        %1861 = vst.msk [vmem:[%s186 + $0x108] sm:$0xff] %vm1827, %v1590
        %1862 = vst.msk [vmem:[%s186 + $0x110] sm:$0xff] %vm1827, %v1593
        %1863 = vst.msk [vmem:[%s186 + $0x118] sm:$0xff] %vm1827, %v1595
        %1864 = vst.msk [vmem:[%s186 + $0x120] sm:$0xff] %vm1827, %v1598
        %1865 = vst.msk [vmem:[%s186 + $0x128] sm:$0xff] %vm1827, %v1600
        %1866 = vst.msk [vmem:[%s186 + $0x130] sm:$0xff] %vm1827, %v1603
        %1867 = vst.msk [vmem:[%s186 + $0x138] sm:$0xff] %vm1827, %v1605
        %1868 = vst.msk [vmem:[%s186 + $0x140] sm:$0xff] %vm1827, %v1608
        %1869 = vst.msk [vmem:[%s186 + $0x148] sm:$0xff] %vm1827, %v1610
        %1870 = vst.msk [vmem:[%s186 + $0x150] sm:$0xff] %vm1827, %v1613
        %1871 = vst.msk [vmem:[%s186 + $0x158] sm:$0xff] %vm1827, %v1615
        %1872 = vst.msk [vmem:[%s186 + $0x160] sm:$0xff] %vm1827, %v1618
        %1873 = vst.msk [vmem:[%s186 + $0x168] sm:$0xff] %vm1827, %v1620
        %1874 = vst.msk [vmem:[%s186 + $0x170] sm:$0xff] %vm1827, %v1623
        %1875 = vst.msk [vmem:[%s186 + $0x178] sm:$0xff] %vm1827, %v1625
        %1876 = vst.msk [vmem:[%s186 + $0x180] sm:$0xff] %vm1827, %v1628
        %1877 = vst.msk [vmem:[%s186 + $0x188] sm:$0xff] %vm1827, %v1630
        %1878 = vst.msk [vmem:[%s186 + $0x190] sm:$0xff] %vm1827, %v1633
        %1879 = vst.msk [vmem:[%s186 + $0x198] sm:$0xff] %vm1827, %v1635
        %1880 = vst.msk [vmem:[%s186 + $0x1a0] sm:$0xff] %vm1827, %v1638
        %1881 = vst.msk [vmem:[%s186 + $0x1a8] sm:$0xff] %vm1827, %v1640
        %1882 = vst.msk [vmem:[%s186 + $0x1b0] sm:$0xff] %vm1827, %v1643
        %1883 = vst.msk [vmem:[%s186 + $0x1b8] sm:$0xff] %vm1827, %v1645
        %1884 = vst.msk [vmem:[%s186 + $0x1c0] sm:$0xff] %vm1827, %v1648
        %1885 = vst.msk [vmem:[%s186 + $0x1c8] sm:$0xff] %vm1827, %v1650
        %1886 = vst.msk [vmem:[%s186 + $0x1d0] sm:$0xff] %vm1827, %v1653
        %1887 = vst.msk [vmem:[%s186 + $0x1d8] sm:$0xff] %vm1827, %v1655
        %1888 = vst.msk [vmem:[%s186 + $0x1e0] sm:$0xff] %vm1827, %v1658
        %1889 = vst.msk [vmem:[%s186 + $0x1e8] sm:$0xff] %vm1827, %v1660
        %1890 = vst.msk [vmem:[%s186 + $0x1f0] sm:$0xff] %vm1827, %v1663
        %1891 = vst.msk [vmem:[%s186 + $0x1f8] sm:$0xff] %vm1827, %v1665
        %1892 = vst.msk [vmem:[%s186 + $0x200] sm:$0xff] %vm1827, %v1668
        %1893 = vst.msk [vmem:[%s186 + $0x208] sm:$0xff] %vm1827, %v1670
        %1894 = vst.msk [vmem:[%s186 + $0x210] sm:$0xff] %vm1827, %v1673
        %1895 = vst.msk [vmem:[%s186 + $0x218] sm:$0xff] %vm1827, %v1675
        %1896 = vst.msk [vmem:[%s186 + $0x220] sm:$0xff] %vm1827, %v1678
        %1897 = vst.msk [vmem:[%s186 + $0x228] sm:$0xff] %vm1827, %v1680
        %1898 = vst.msk [vmem:[%s186 + $0x230] sm:$0xff] %vm1827, %v1683
        %1899 = vst.msk [vmem:[%s186 + $0x238] sm:$0xff] %vm1827, %v1685
        %1900 = vst.msk [vmem:[%s186 + $0x240] sm:$0xff] %vm1827, %v1688
        %1901 = vst.msk [vmem:[%s186 + $0x248] sm:$0xff] %vm1827, %v1690
        %1902 = vst.msk [vmem:[%s186 + $0x250] sm:$0xff] %vm1827, %v1693
        %1903 = vst.msk [vmem:[%s186 + $0x258] sm:$0xff] %vm1827, %v1695
        %1904 = vst.msk [vmem:[%s186 + $0x260] sm:$0xff] %vm1827, %v1698
        %1905 = vst.msk [vmem:[%s186 + $0x268] sm:$0xff] %vm1827, %v1700
        %1906 = vst.msk [vmem:[%s186 + $0x270] sm:$0xff] %vm1827, %v1703
        %1907 = vst.msk [vmem:[%s186 + $0x278] sm:$0xff] %vm1827, %v1705
        %1908 = vst.msk [vmem:[%s186 + $0x280] sm:$0xff] %vm1827, %v1708
        %1909 = vst.msk [vmem:[%s186 + $0x288] sm:$0xff] %vm1827, %v1710
        %1910 = vst.msk [vmem:[%s186 + $0x290] sm:$0xff] %vm1827, %v1713
        %1911 = vst.msk [vmem:[%s186 + $0x298] sm:$0xff] %vm1827, %v1715
        %1912 = vst.msk [vmem:[%s186 + $0x2a0] sm:$0xff] %vm1827, %v1718
        %1913 = vst.msk [vmem:[%s186 + $0x2a8] sm:$0xff] %vm1827, %v1720
        %1914 = vst.msk [vmem:[%s186 + $0x2b0] sm:$0xff] %vm1827, %v1723
        %1915 = vst.msk [vmem:[%s186 + $0x2b8] sm:$0xff] %vm1827, %v1725
        %1916 = vst.msk [vmem:[%s186 + $0x2c0] sm:$0xff] %vm1827, %v1728
        %1917 = vst.msk [vmem:[%s186 + $0x2c8] sm:$0xff] %vm1827, %v1730
        %1918 = vst.msk [vmem:[%s186 + $0x2d0] sm:$0xff] %vm1827, %v1733
        %1919 = vst.msk [vmem:[%s186 + $0x2d8] sm:$0xff] %vm1827, %v1735
        %1920 = vst.msk [vmem:[%s186 + $0x2e0] sm:$0xff] %vm1827, %v1738
        %1921 = vst.msk [vmem:[%s186 + $0x2e8] sm:$0xff] %vm1827, %v1740
        %1922 = vst.msk [vmem:[%s186 + $0x2f0] sm:$0xff] %vm1827, %v1743
        %1923 = vst.msk [vmem:[%s186 + $0x2f8] sm:$0xff] %vm1827, %v1745
        %1924 = vst.msk [vmem:[%s186 + $0x300] sm:$0xff] %vm1827, %v1748
        %1925 = vst.msk [vmem:[%s186 + $0x308] sm:$0xff] %vm1827, %v1750
        %1926 = vst.msk [vmem:[%s186 + $0x310] sm:$0xff] %vm1827, %v1753
        %1927 = vst.msk [vmem:[%s186 + $0x318] sm:$0xff] %vm1827, %v1755
        %1928 = vst.msk [vmem:[%s186 + $0x320] sm:$0xff] %vm1827, %v1758
        %1929 = vst.msk [vmem:[%s186 + $0x328] sm:$0xff] %vm1827, %v1760
        %1930 = vst.msk [vmem:[%s186 + $0x330] sm:$0xff] %vm1827, %v1763
        %1931 = vst.msk [vmem:[%s186 + $0x338] sm:$0xff] %vm1827, %v1765
        %1932 = vst.msk [vmem:[%s186 + $0x340] sm:$0xff] %vm1827, %v1768
        %1933 = vst.msk [vmem:[%s186 + $0x348] sm:$0xff] %vm1827, %v1770
        %1934 = vst.msk [vmem:[%s186 + $0x350] sm:$0xff] %vm1827, %v1773
        %1935 = vst.msk [vmem:[%s186 + $0x358] sm:$0xff] %vm1827, %v1775
        %1936 = vst.msk [vmem:[%s186 + $0x360] sm:$0xff] %vm1827, %v1778
        %1937 = vst.msk [vmem:[%s186 + $0x368] sm:$0xff] %vm1827, %v1780
        %1938 = vst.msk [vmem:[%s186 + $0x370] sm:$0xff] %vm1827, %v1783
        %1939 = vst.msk [vmem:[%s186 + $0x378] sm:$0xff] %vm1827, %v1785
        %1940 = vst.msk [vmem:[%s186 + $0x380] sm:$0xff] %vm1827, %v1788
        %1941 = vst.msk [vmem:[%s186 + $0x388] sm:$0xff] %vm1827, %v1790
        %1942 = vst.msk [vmem:[%s186 + $0x390] sm:$0xff] %vm1827, %v1793
        %1943 = vst.msk [vmem:[%s186 + $0x398] sm:$0xff] %vm1827, %v1795
        %1944 = vst.msk [vmem:[%s186 + $0x3a0] sm:$0xff] %vm1827, %v1798
        %1945 = vst.msk [vmem:[%s186 + $0x3a8] sm:$0xff] %vm1827, %v1800
        %1946 = vst.msk [vmem:[%s186 + $0x3b0] sm:$0xff] %vm1827, %v1803
        %1947 = vst.msk [vmem:[%s186 + $0x3b8] sm:$0xff] %vm1827, %v1805
        %1948 = vst.msk [vmem:[%s186 + $0x3c0] sm:$0xff] %vm1827, %v1808
        %1949 = vst.msk [vmem:[%s186 + $0x3c8] sm:$0xff] %vm1827, %v1810
        %1950 = vst.msk [vmem:[%s186 + $0x3d0] sm:$0xff] %vm1827, %v1813
        %1951 = vst.msk [vmem:[%s186 + $0x3d8] sm:$0xff] %vm1827, %v1815
        %1952 = vst.msk [vmem:[%s186 + $0x3e0] sm:$0xff] %vm1827, %v1818
        %1953 = vst.msk [vmem:[%s186 + $0x3e8] sm:$0xff] %vm1827, %v1820
        %1954 = vst.msk [vmem:[%s186 + $0x3f0] sm:$0xff] %vm1827, %v1823
        %1955 = vst.msk [vmem:[%s186 + $0x3f8] sm:$0xff] %vm1827, %v1825
        %v1956 = vsel %vm1827, %v1508, 0.0
        %v1957 = vsel %vm1827, %v1510, 0.0
        %v1958 = vadd.f32 %v1956, %v1957
        %v1959 = vsel %vm1827, %v1513, 0.0
        %v1960 = vadd.f32 %v1958, %v1959
        %v1961 = vsel %vm1827, %v1515, 0.0
        %v1962 = vadd.f32 %v1960, %v1961
        %v1963 = vsel %vm1827, %v1518, 0.0
        %v1964 = vadd.f32 %v1962, %v1963
        %v1965 = vsel %vm1827, %v1520, 0.0
        %v1966 = vadd.f32 %v1964, %v1965
        %v1967 = vsel %vm1827, %v1523, 0.0
        %v1968 = vadd.f32 %v1966, %v1967
        %v1969 = vsel %vm1827, %v1525, 0.0
        %v1970 = vadd.f32 %v1968, %v1969
        %v1971 = vsel %vm1827, %v1528, 0.0
        %v1972 = vadd.f32 %v1970, %v1971
        %v1973 = vsel %vm1827, %v1530, 0.0
        %v1974 = vadd.f32 %v1972, %v1973
        %v1975 = vsel %vm1827, %v1533, 0.0
        %v1976 = vadd.f32 %v1974, %v1975
        %v1977 = vsel %vm1827, %v1535, 0.0
        %v1978 = vadd.f32 %v1976, %v1977
        %v1979 = vsel %vm1827, %v1538, 0.0
        %v1980 = vadd.f32 %v1978, %v1979
        %v1981 = vsel %vm1827, %v1540, 0.0
        %v1982 = vadd.f32 %v1980, %v1981
        %v1983 = vsel %vm1827, %v1543, 0.0
        %v1984 = vadd.f32 %v1982, %v1983
        %v1985 = vsel %vm1827, %v1545, 0.0
        %v1986 = vadd.f32 %v1984, %v1985
        %v1987 = vsel %vm1827, %v1548, 0.0
        %v1988 = vadd.f32 %v1986, %v1987
        %v1989 = vsel %vm1827, %v1550, 0.0
        %v1990 = vadd.f32 %v1988, %v1989
        %v1991 = vsel %vm1827, %v1553, 0.0
        %v1992 = vadd.f32 %v1990, %v1991
        %v1993 = vsel %vm1827, %v1555, 0.0
        %v1994 = vadd.f32 %v1992, %v1993
        %v1995 = vsel %vm1827, %v1558, 0.0
        %v1996 = vadd.f32 %v1994, %v1995
        %v1997 = vsel %vm1827, %v1560, 0.0
        %v1998 = vadd.f32 %v1996, %v1997
        %v1999 = vsel %vm1827, %v1563, 0.0
        %v2000 = vadd.f32 %v1998, %v1999
        %v2001 = vsel %vm1827, %v1565, 0.0
        %v2002 = vadd.f32 %v2000, %v2001
        %v2003 = vsel %vm1827, %v1568, 0.0
        %v2004 = vadd.f32 %v2002, %v2003
        %v2005 = vsel %vm1827, %v1570, 0.0
        %v2006 = vadd.f32 %v2004, %v2005
        %v2007 = vsel %vm1827, %v1573, 0.0
        %v2008 = vadd.f32 %v2006, %v2007
        %v2009 = vsel %vm1827, %v1575, 0.0
        %v2010 = vadd.f32 %v2008, %v2009
        %v2011 = vsel %vm1827, %v1578, 0.0
        %v2012 = vadd.f32 %v2010, %v2011
        %v2013 = vsel %vm1827, %v1580, 0.0
        %v2014 = vadd.f32 %v2012, %v2013
        %v2015 = vsel %vm1827, %v1583, 0.0
        %v2016 = vadd.f32 %v2014, %v2015
        %v2017 = vsel %vm1827, %v1585, 0.0
        %v2018 = vadd.f32 %v2016, %v2017
        %v2019 = vsel %vm1827, %v1588, 0.0
        %v2020 = vadd.f32 %v2018, %v2019
        %v2021 = vsel %vm1827, %v1590, 0.0
        %v2022 = vadd.f32 %v2020, %v2021
        %v2023 = vsel %vm1827, %v1593, 0.0
        %v2024 = vadd.f32 %v2022, %v2023
        %v2025 = vsel %vm1827, %v1595, 0.0
        %v2026 = vadd.f32 %v2024, %v2025
        %v2027 = vsel %vm1827, %v1598, 0.0
        %v2028 = vadd.f32 %v2026, %v2027
        %v2029 = vsel %vm1827, %v1600, 0.0
        %v2030 = vadd.f32 %v2028, %v2029
        %v2031 = vsel %vm1827, %v1603, 0.0
        %v2032 = vadd.f32 %v2030, %v2031
        %v2033 = vsel %vm1827, %v1605, 0.0
        %v2034 = vadd.f32 %v2032, %v2033
        %v2035 = vsel %vm1827, %v1608, 0.0
        %v2036 = vadd.f32 %v2034, %v2035
        %v2037 = vsel %vm1827, %v1610, 0.0
        %v2038 = vadd.f32 %v2036, %v2037
        %v2039 = vsel %vm1827, %v1613, 0.0
        %v2040 = vadd.f32 %v2038, %v2039
        %v2041 = vsel %vm1827, %v1615, 0.0
        %v2042 = vadd.f32 %v2040, %v2041
        %v2043 = vsel %vm1827, %v1618, 0.0
        %v2044 = vadd.f32 %v2042, %v2043
        %v2045 = vsel %vm1827, %v1620, 0.0
        %v2046 = vadd.f32 %v2044, %v2045
        %v2047 = vsel %vm1827, %v1623, 0.0
        %v2048 = vadd.f32 %v2046, %v2047
        %v2049 = vsel %vm1827, %v1625, 0.0
        %v2050 = vadd.f32 %v2048, %v2049
        %v2051 = vsel %vm1827, %v1628, 0.0
        %v2052 = vadd.f32 %v2050, %v2051
        %v2053 = vsel %vm1827, %v1630, 0.0
        %v2054 = vadd.f32 %v2052, %v2053
        %v2055 = vsel %vm1827, %v1633, 0.0
        %v2056 = vadd.f32 %v2054, %v2055
        %v2057 = vsel %vm1827, %v1635, 0.0
        %v2058 = vadd.f32 %v2056, %v2057
        %v2059 = vsel %vm1827, %v1638, 0.0
        %v2060 = vadd.f32 %v2058, %v2059
        %v2061 = vsel %vm1827, %v1640, 0.0
        %v2062 = vadd.f32 %v2060, %v2061
        %v2063 = vsel %vm1827, %v1643, 0.0
        %v2064 = vadd.f32 %v2062, %v2063
        %v2065 = vsel %vm1827, %v1645, 0.0
        %v2066 = vadd.f32 %v2064, %v2065
        %v2067 = vsel %vm1827, %v1648, 0.0
        %v2068 = vadd.f32 %v2066, %v2067
        %v2069 = vsel %vm1827, %v1650, 0.0
        %v2070 = vadd.f32 %v2068, %v2069
        %v2071 = vsel %vm1827, %v1653, 0.0
        %v2072 = vadd.f32 %v2070, %v2071
        %v2073 = vsel %vm1827, %v1655, 0.0
        %v2074 = vadd.f32 %v2072, %v2073
        %v2075 = vsel %vm1827, %v1658, 0.0
        %v2076 = vadd.f32 %v2074, %v2075
        %v2077 = vsel %vm1827, %v1660, 0.0
        %v2078 = vadd.f32 %v2076, %v2077
        %v2079 = vsel %vm1827, %v1663, 0.0
        %v2080 = vadd.f32 %v2078, %v2079
        %v2081 = vsel %vm1827, %v1665, 0.0
        %v2082 = vadd.f32 %v2080, %v2081
        %v2083 = vsel %vm1827, %v1668, 0.0
        %v2084 = vadd.f32 %v2082, %v2083
        %v2085 = vsel %vm1827, %v1670, 0.0
        %v2086 = vadd.f32 %v2084, %v2085
        %v2087 = vsel %vm1827, %v1673, 0.0
        %v2088 = vadd.f32 %v2086, %v2087
        %v2089 = vsel %vm1827, %v1675, 0.0
        %v2090 = vadd.f32 %v2088, %v2089
        %v2091 = vsel %vm1827, %v1678, 0.0
        %v2092 = vadd.f32 %v2090, %v2091
        %v2093 = vsel %vm1827, %v1680, 0.0
        %v2094 = vadd.f32 %v2092, %v2093
        %v2095 = vsel %vm1827, %v1683, 0.0
        %v2096 = vadd.f32 %v2094, %v2095
        %v2097 = vsel %vm1827, %v1685, 0.0
        %v2098 = vadd.f32 %v2096, %v2097
        %v2099 = vsel %vm1827, %v1688, 0.0
        %v2100 = vadd.f32 %v2098, %v2099
        %v2101 = vsel %vm1827, %v1690, 0.0
        %v2102 = vadd.f32 %v2100, %v2101
        %v2103 = vsel %vm1827, %v1693, 0.0
        %v2104 = vadd.f32 %v2102, %v2103
        %v2105 = vsel %vm1827, %v1695, 0.0
        %v2106 = vadd.f32 %v2104, %v2105
        %v2107 = vsel %vm1827, %v1698, 0.0
        %v2108 = vadd.f32 %v2106, %v2107
        %v2109 = vsel %vm1827, %v1700, 0.0
        %v2110 = vadd.f32 %v2108, %v2109
        %v2111 = vsel %vm1827, %v1703, 0.0
        %v2112 = vadd.f32 %v2110, %v2111
        %v2113 = vsel %vm1827, %v1705, 0.0
        %v2114 = vadd.f32 %v2112, %v2113
        %v2115 = vsel %vm1827, %v1708, 0.0
        %v2116 = vadd.f32 %v2114, %v2115
        %v2117 = vsel %vm1827, %v1710, 0.0
        %v2118 = vadd.f32 %v2116, %v2117
        %v2119 = vsel %vm1827, %v1713, 0.0
        %v2120 = vadd.f32 %v2118, %v2119
        %v2121 = vsel %vm1827, %v1715, 0.0
        %v2122 = vadd.f32 %v2120, %v2121
        %v2123 = vsel %vm1827, %v1718, 0.0
        %v2124 = vadd.f32 %v2122, %v2123
        %v2125 = vsel %vm1827, %v1720, 0.0
        %v2126 = vadd.f32 %v2124, %v2125
        %v2127 = vsel %vm1827, %v1723, 0.0
        %v2128 = vadd.f32 %v2126, %v2127
        %v2129 = vsel %vm1827, %v1725, 0.0
        %v2130 = vadd.f32 %v2128, %v2129
        %v2131 = vsel %vm1827, %v1728, 0.0
        %v2132 = vadd.f32 %v2130, %v2131
        %v2133 = vsel %vm1827, %v1730, 0.0
        %v2134 = vadd.f32 %v2132, %v2133
        %v2135 = vsel %vm1827, %v1733, 0.0
        %v2136 = vadd.f32 %v2134, %v2135
        %v2137 = vsel %vm1827, %v1735, 0.0
        %v2138 = vadd.f32 %v2136, %v2137
        %v2139 = vsel %vm1827, %v1738, 0.0
        %v2140 = vadd.f32 %v2138, %v2139
        %v2141 = vsel %vm1827, %v1740, 0.0
        %v2142 = vadd.f32 %v2140, %v2141
        %v2143 = vsel %vm1827, %v1743, 0.0
        %v2144 = vadd.f32 %v2142, %v2143
        %v2145 = vsel %vm1827, %v1745, 0.0
        %v2146 = vadd.f32 %v2144, %v2145
        %v2147 = vsel %vm1827, %v1748, 0.0
        %v2148 = vadd.f32 %v2146, %v2147
        %v2149 = vsel %vm1827, %v1750, 0.0
        %v2150 = vadd.f32 %v2148, %v2149
        %v2151 = vsel %vm1827, %v1753, 0.0
        %v2152 = vadd.f32 %v2150, %v2151
        %v2153 = vsel %vm1827, %v1755, 0.0
        %v2154 = vadd.f32 %v2152, %v2153
        %v2155 = vsel %vm1827, %v1758, 0.0
        %v2156 = vadd.f32 %v2154, %v2155
        %v2157 = vsel %vm1827, %v1760, 0.0
        %v2158 = vadd.f32 %v2156, %v2157
        %v2159 = vsel %vm1827, %v1763, 0.0
        %v2160 = vadd.f32 %v2158, %v2159
        %v2161 = vsel %vm1827, %v1765, 0.0
        %v2162 = vadd.f32 %v2160, %v2161
        %v2163 = vsel %vm1827, %v1768, 0.0
        %v2164 = vadd.f32 %v2162, %v2163
        %v2165 = vsel %vm1827, %v1770, 0.0
        %v2166 = vadd.f32 %v2164, %v2165
        %v2167 = vsel %vm1827, %v1773, 0.0
        %v2168 = vadd.f32 %v2166, %v2167
        %v2169 = vsel %vm1827, %v1775, 0.0
        %v2170 = vadd.f32 %v2168, %v2169
        %v2171 = vsel %vm1827, %v1778, 0.0
        %v2172 = vadd.f32 %v2170, %v2171
        %v2173 = vsel %vm1827, %v1780, 0.0
        %v2174 = vadd.f32 %v2172, %v2173
        %v2175 = vsel %vm1827, %v1783, 0.0
        %v2176 = vadd.f32 %v2174, %v2175
        %v2177 = vsel %vm1827, %v1785, 0.0
        %v2178 = vadd.f32 %v2176, %v2177
        %v2179 = vsel %vm1827, %v1788, 0.0
        %v2180 = vadd.f32 %v2178, %v2179
        %v2181 = vsel %vm1827, %v1790, 0.0
        %v2182 = vadd.f32 %v2180, %v2181
        %v2183 = vsel %vm1827, %v1793, 0.0
        %v2184 = vadd.f32 %v2182, %v2183
        %v2185 = vsel %vm1827, %v1795, 0.0
        %v2186 = vadd.f32 %v2184, %v2185
        %v2187 = vsel %vm1827, %v1798, 0.0
        %v2188 = vadd.f32 %v2186, %v2187
        %v2189 = vsel %vm1827, %v1800, 0.0
        %v2190 = vadd.f32 %v2188, %v2189
        %v2191 = vsel %vm1827, %v1803, 0.0
        %v2192 = vadd.f32 %v2190, %v2191
        %v2193 = vsel %vm1827, %v1805, 0.0
        %v2194 = vadd.f32 %v2192, %v2193
        %v2195 = vsel %vm1827, %v1808, 0.0
        %v2196 = vadd.f32 %v2194, %v2195
        %v2197 = vsel %vm1827, %v1810, 0.0
        %v2198 = vadd.f32 %v2196, %v2197
        %v2199 = vsel %vm1827, %v1813, 0.0
        %v2200 = vadd.f32 %v2198, %v2199
        %v2201 = vsel %vm1827, %v1815, 0.0
        %v2202 = vadd.f32 %v2200, %v2201
        %v2203 = vsel %vm1827, %v1818, 0.0
        %v2204 = vadd.f32 %v2202, %v2203
        %v2205 = vsel %vm1827, %v1820, 0.0
        %v2206 = vadd.f32 %v2204, %v2205
        %v2207 = vsel %vm1827, %v1823, 0.0
        %v2208 = vadd.f32 %v2206, %v2207
        %v2209 = vsel %vm1827, %v1825, 0.0
        %v2210 = vadd.f32 %v2208, %v2209
        %v2211 = vrot.slane %v2210, 4
        %v2212 = vadd.f32 %v2210, %v2211
        %v2213 = vrot.slane %v2212, 2
        %v2214 = vadd.f32 %v2212, %v2213
        %v2215 = vrot.slane %v2214, 1
        %v2216 = vadd.f32 %v2214, %v2215
        %vm2217 = vcmask 516096
        %2218 = vst.msk [vmem:[%s174] sm:$0x1] %vm2217, %v2216
        %v2219 = vmul.f32 %v1508, %v1508
        %v2220 = vmul.f32 %v1510, %v1510
        %v2221 = vmul.f32 %v1513, %v1513
        %v2222 = vmul.f32 %v1515, %v1515
        %v2223 = vmul.f32 %v1518, %v1518
        %v2224 = vmul.f32 %v1520, %v1520
        %v2225 = vmul.f32 %v1523, %v1523
        %v2226 = vmul.f32 %v1525, %v1525
        %v2227 = vmul.f32 %v1528, %v1528
        %v2228 = vmul.f32 %v1530, %v1530
        %v2229 = vmul.f32 %v1533, %v1533
        %v2230 = vmul.f32 %v1535, %v1535
        %v2231 = vmul.f32 %v1538, %v1538
        %v2232 = vmul.f32 %v1540, %v1540
        %v2233 = vmul.f32 %v1543, %v1543
        %v2234 = vmul.f32 %v1545, %v1545
        %v2235 = vmul.f32 %v1548, %v1548
        %v2236 = vmul.f32 %v1550, %v1550
        %v2237 = vmul.f32 %v1553, %v1553
        %v2238 = vmul.f32 %v1555, %v1555
        %v2239 = vmul.f32 %v1558, %v1558
        %v2240 = vmul.f32 %v1560, %v1560
        %v2241 = vmul.f32 %v1563, %v1563
        %v2242 = vmul.f32 %v1565, %v1565
        %v2243 = vmul.f32 %v1568, %v1568
        %v2244 = vmul.f32 %v1570, %v1570
        %v2245 = vmul.f32 %v1573, %v1573
        %v2246 = vmul.f32 %v1575, %v1575
        %v2247 = vmul.f32 %v1578, %v1578
        %v2248 = vmul.f32 %v1580, %v1580
        %v2249 = vmul.f32 %v1583, %v1583
        %v2250 = vmul.f32 %v1585, %v1585
        %v2251 = vmul.f32 %v1588, %v1588
        %v2252 = vmul.f32 %v1590, %v1590
        %v2253 = vmul.f32 %v1593, %v1593
        %v2254 = vmul.f32 %v1595, %v1595
        %v2255 = vmul.f32 %v1598, %v1598
        %v2256 = vmul.f32 %v1600, %v1600
        %v2257 = vmul.f32 %v1603, %v1603
        %v2258 = vmul.f32 %v1605, %v1605
        %v2259 = vmul.f32 %v1608, %v1608
        %v2260 = vmul.f32 %v1610, %v1610
        %v2261 = vmul.f32 %v1613, %v1613
        %v2262 = vmul.f32 %v1615, %v1615
        %v2263 = vmul.f32 %v1618, %v1618
        %v2264 = vmul.f32 %v1620, %v1620
        %v2265 = vmul.f32 %v1623, %v1623
        %v2266 = vmul.f32 %v1625, %v1625
        %v2267 = vmul.f32 %v1628, %v1628
        %v2268 = vmul.f32 %v1630, %v1630
        %v2269 = vmul.f32 %v1633, %v1633
        %v2270 = vmul.f32 %v1635, %v1635
        %v2271 = vmul.f32 %v1638, %v1638
        %v2272 = vmul.f32 %v1640, %v1640
        %v2273 = vmul.f32 %v1643, %v1643
        %v2274 = vmul.f32 %v1645, %v1645
        %v2275 = vmul.f32 %v1648, %v1648
        %v2276 = vmul.f32 %v1650, %v1650
        %v2277 = vmul.f32 %v1653, %v1653
        %v2278 = vmul.f32 %v1655, %v1655
        %v2279 = vmul.f32 %v1658, %v1658
        %v2280 = vmul.f32 %v1660, %v1660
        %v2281 = vmul.f32 %v1663, %v1663
        %v2282 = vmul.f32 %v1665, %v1665
        %v2283 = vmul.f32 %v1668, %v1668
        %v2284 = vmul.f32 %v1670, %v1670
        %v2285 = vmul.f32 %v1673, %v1673
        %v2286 = vmul.f32 %v1675, %v1675
        %v2287 = vmul.f32 %v1678, %v1678
        %v2288 = vmul.f32 %v1680, %v1680
        %v2289 = vmul.f32 %v1683, %v1683
        %v2290 = vmul.f32 %v1685, %v1685
        %v2291 = vmul.f32 %v1688, %v1688
        %v2292 = vmul.f32 %v1690, %v1690
        %v2293 = vmul.f32 %v1693, %v1693
        %v2294 = vmul.f32 %v1695, %v1695
        %v2295 = vmul.f32 %v1698, %v1698
        %v2296 = vmul.f32 %v1700, %v1700
        %v2297 = vmul.f32 %v1703, %v1703
        %v2298 = vmul.f32 %v1705, %v1705
        %v2299 = vmul.f32 %v1708, %v1708
        %v2300 = vmul.f32 %v1710, %v1710
        %v2301 = vmul.f32 %v1713, %v1713
        %v2302 = vmul.f32 %v1715, %v1715
        %v2303 = vmul.f32 %v1718, %v1718
        %v2304 = vmul.f32 %v1720, %v1720
        %v2305 = vmul.f32 %v1723, %v1723
        %v2306 = vmul.f32 %v1725, %v1725
        %v2307 = vmul.f32 %v1728, %v1728
        %v2308 = vmul.f32 %v1730, %v1730
        %v2309 = vmul.f32 %v1733, %v1733
        %v2310 = vmul.f32 %v1735, %v1735
        %v2311 = vmul.f32 %v1738, %v1738
        %v2312 = vmul.f32 %v1740, %v1740
        %v2313 = vmul.f32 %v1743, %v1743
        %v2314 = vmul.f32 %v1745, %v1745
        %v2315 = vmul.f32 %v1748, %v1748
        %v2316 = vmul.f32 %v1750, %v1750
        %v2317 = vmul.f32 %v1753, %v1753
        %v2318 = vmul.f32 %v1755, %v1755
        %v2319 = vmul.f32 %v1758, %v1758
        %v2320 = vmul.f32 %v1760, %v1760
        %v2321 = vmul.f32 %v1763, %v1763
        %v2322 = vmul.f32 %v1765, %v1765
        %v2323 = vmul.f32 %v1768, %v1768
        %v2324 = vmul.f32 %v1770, %v1770
        %v2325 = vmul.f32 %v1773, %v1773
        %v2326 = vmul.f32 %v1775, %v1775
        %v2327 = vmul.f32 %v1778, %v1778
        %v2328 = vmul.f32 %v1780, %v1780
        %v2329 = vmul.f32 %v1783, %v1783
        %v2330 = vmul.f32 %v1785, %v1785
        %v2331 = vmul.f32 %v1788, %v1788
        %v2332 = vmul.f32 %v1790, %v1790
        %v2333 = vmul.f32 %v1793, %v1793
        %v2334 = vmul.f32 %v1795, %v1795
        %v2335 = vmul.f32 %v1798, %v1798
        %v2336 = vmul.f32 %v1800, %v1800
        %v2337 = vmul.f32 %v1803, %v1803
        %v2338 = vmul.f32 %v1805, %v1805
        %v2339 = vmul.f32 %v1808, %v1808
        %v2340 = vmul.f32 %v1810, %v1810
        %v2341 = vmul.f32 %v1813, %v1813
        %v2342 = vmul.f32 %v1815, %v1815
        %v2343 = vmul.f32 %v1818, %v1818
        %v2344 = vmul.f32 %v1820, %v1820
        %v2345 = vmul.f32 %v1823, %v1823
        %v2346 = vmul.f32 %v1825, %v1825
        %v2347 = vsel %vm1827, %v2219, 0.0
        %v2348 = vsel %vm1827, %v2220, 0.0
        %v2349 = vadd.f32 %v2347, %v2348
        %v2350 = vsel %vm1827, %v2221, 0.0
        %v2351 = vadd.f32 %v2349, %v2350
        %v2352 = vsel %vm1827, %v2222, 0.0
        %v2353 = vadd.f32 %v2351, %v2352
        %v2354 = vsel %vm1827, %v2223, 0.0
        %v2355 = vadd.f32 %v2353, %v2354
        %v2356 = vsel %vm1827, %v2224, 0.0
        %v2357 = vadd.f32 %v2355, %v2356
        %v2358 = vsel %vm1827, %v2225, 0.0
        %v2359 = vadd.f32 %v2357, %v2358
        %v2360 = vsel %vm1827, %v2226, 0.0
        %v2361 = vadd.f32 %v2359, %v2360
        %v2362 = vsel %vm1827, %v2227, 0.0
        %v2363 = vadd.f32 %v2361, %v2362
        %v2364 = vsel %vm1827, %v2228, 0.0
        %v2365 = vadd.f32 %v2363, %v2364
        %v2366 = vsel %vm1827, %v2229, 0.0
        %v2367 = vadd.f32 %v2365, %v2366
        %v2368 = vsel %vm1827, %v2230, 0.0
        %v2369 = vadd.f32 %v2367, %v2368
        %v2370 = vsel %vm1827, %v2231, 0.0
        %v2371 = vadd.f32 %v2369, %v2370
        %v2372 = vsel %vm1827, %v2232, 0.0
        %v2373 = vadd.f32 %v2371, %v2372
        %v2374 = vsel %vm1827, %v2233, 0.0
        %v2375 = vadd.f32 %v2373, %v2374
        %v2376 = vsel %vm1827, %v2234, 0.0
        %v2377 = vadd.f32 %v2375, %v2376
        %v2378 = vsel %vm1827, %v2235, 0.0
        %v2379 = vadd.f32 %v2377, %v2378
        %v2380 = vsel %vm1827, %v2236, 0.0
        %v2381 = vadd.f32 %v2379, %v2380
        %v2382 = vsel %vm1827, %v2237, 0.0
        %v2383 = vadd.f32 %v2381, %v2382
        %v2384 = vsel %vm1827, %v2238, 0.0
        %v2385 = vadd.f32 %v2383, %v2384
        %v2386 = vsel %vm1827, %v2239, 0.0
        %v2387 = vadd.f32 %v2385, %v2386
        %v2388 = vsel %vm1827, %v2240, 0.0
        %v2389 = vadd.f32 %v2387, %v2388
        %v2390 = vsel %vm1827, %v2241, 0.0
        %v2391 = vadd.f32 %v2389, %v2390
        %v2392 = vsel %vm1827, %v2242, 0.0
        %v2393 = vadd.f32 %v2391, %v2392
        %v2394 = vsel %vm1827, %v2243, 0.0
        %v2395 = vadd.f32 %v2393, %v2394
        %v2396 = vsel %vm1827, %v2244, 0.0
        %v2397 = vadd.f32 %v2395, %v2396
        %v2398 = vsel %vm1827, %v2245, 0.0
        %v2399 = vadd.f32 %v2397, %v2398
        %v2400 = vsel %vm1827, %v2246, 0.0
        %v2401 = vadd.f32 %v2399, %v2400
        %v2402 = vsel %vm1827, %v2247, 0.0
        %v2403 = vadd.f32 %v2401, %v2402
        %v2404 = vsel %vm1827, %v2248, 0.0
        %v2405 = vadd.f32 %v2403, %v2404
        %v2406 = vsel %vm1827, %v2249, 0.0
        %v2407 = vadd.f32 %v2405, %v2406
        %v2408 = vsel %vm1827, %v2250, 0.0
        %v2409 = vadd.f32 %v2407, %v2408
        %v2410 = vsel %vm1827, %v2251, 0.0
        %v2411 = vadd.f32 %v2409, %v2410
        %v2412 = vsel %vm1827, %v2252, 0.0
        %v2413 = vadd.f32 %v2411, %v2412
        %v2414 = vsel %vm1827, %v2253, 0.0
        %v2415 = vadd.f32 %v2413, %v2414
        %v2416 = vsel %vm1827, %v2254, 0.0
        %v2417 = vadd.f32 %v2415, %v2416
        %v2418 = vsel %vm1827, %v2255, 0.0
        %v2419 = vadd.f32 %v2417, %v2418
        %v2420 = vsel %vm1827, %v2256, 0.0
        %v2421 = vadd.f32 %v2419, %v2420
        %v2422 = vsel %vm1827, %v2257, 0.0
        %v2423 = vadd.f32 %v2421, %v2422
        %v2424 = vsel %vm1827, %v2258, 0.0
        %v2425 = vadd.f32 %v2423, %v2424
        %v2426 = vsel %vm1827, %v2259, 0.0
        %v2427 = vadd.f32 %v2425, %v2426
        %v2428 = vsel %vm1827, %v2260, 0.0
        %v2429 = vadd.f32 %v2427, %v2428
        %v2430 = vsel %vm1827, %v2261, 0.0
        %v2431 = vadd.f32 %v2429, %v2430
        %v2432 = vsel %vm1827, %v2262, 0.0
        %v2433 = vadd.f32 %v2431, %v2432
        %v2434 = vsel %vm1827, %v2263, 0.0
        %v2435 = vadd.f32 %v2433, %v2434
        %v2436 = vsel %vm1827, %v2264, 0.0
        %v2437 = vadd.f32 %v2435, %v2436
        %v2438 = vsel %vm1827, %v2265, 0.0
        %v2439 = vadd.f32 %v2437, %v2438
        %v2440 = vsel %vm1827, %v2266, 0.0
        %v2441 = vadd.f32 %v2439, %v2440
        %v2442 = vsel %vm1827, %v2267, 0.0
        %v2443 = vadd.f32 %v2441, %v2442
        %v2444 = vsel %vm1827, %v2268, 0.0
        %v2445 = vadd.f32 %v2443, %v2444
        %v2446 = vsel %vm1827, %v2269, 0.0
        %v2447 = vadd.f32 %v2445, %v2446
        %v2448 = vsel %vm1827, %v2270, 0.0
        %v2449 = vadd.f32 %v2447, %v2448
        %v2450 = vsel %vm1827, %v2271, 0.0
        %v2451 = vadd.f32 %v2449, %v2450
        %v2452 = vsel %vm1827, %v2272, 0.0
        %v2453 = vadd.f32 %v2451, %v2452
        %v2454 = vsel %vm1827, %v2273, 0.0
        %v2455 = vadd.f32 %v2453, %v2454
        %v2456 = vsel %vm1827, %v2274, 0.0
        %v2457 = vadd.f32 %v2455, %v2456
        %v2458 = vsel %vm1827, %v2275, 0.0
        %v2459 = vadd.f32 %v2457, %v2458
        %v2460 = vsel %vm1827, %v2276, 0.0
        %v2461 = vadd.f32 %v2459, %v2460
        %v2462 = vsel %vm1827, %v2277, 0.0
        %v2463 = vadd.f32 %v2461, %v2462
        %v2464 = vsel %vm1827, %v2278, 0.0
        %v2465 = vadd.f32 %v2463, %v2464
        %v2466 = vsel %vm1827, %v2279, 0.0
        %v2467 = vadd.f32 %v2465, %v2466
        %v2468 = vsel %vm1827, %v2280, 0.0
        %v2469 = vadd.f32 %v2467, %v2468
        %v2470 = vsel %vm1827, %v2281, 0.0
        %v2471 = vadd.f32 %v2469, %v2470
        %v2472 = vsel %vm1827, %v2282, 0.0
        %v2473 = vadd.f32 %v2471, %v2472
        %v2474 = vsel %vm1827, %v2283, 0.0
        %v2475 = vadd.f32 %v2473, %v2474
        %v2476 = vsel %vm1827, %v2284, 0.0
        %v2477 = vadd.f32 %v2475, %v2476
        %v2478 = vsel %vm1827, %v2285, 0.0
        %v2479 = vadd.f32 %v2477, %v2478
        %v2480 = vsel %vm1827, %v2286, 0.0
        %v2481 = vadd.f32 %v2479, %v2480
        %v2482 = vsel %vm1827, %v2287, 0.0
        %v2483 = vadd.f32 %v2481, %v2482
        %v2484 = vsel %vm1827, %v2288, 0.0
        %v2485 = vadd.f32 %v2483, %v2484
        %v2486 = vsel %vm1827, %v2289, 0.0
        %v2487 = vadd.f32 %v2485, %v2486
        %v2488 = vsel %vm1827, %v2290, 0.0
        %v2489 = vadd.f32 %v2487, %v2488
        %v2490 = vsel %vm1827, %v2291, 0.0
        %v2491 = vadd.f32 %v2489, %v2490
        %v2492 = vsel %vm1827, %v2292, 0.0
        %v2493 = vadd.f32 %v2491, %v2492
        %v2494 = vsel %vm1827, %v2293, 0.0
        %v2495 = vadd.f32 %v2493, %v2494
        %v2496 = vsel %vm1827, %v2294, 0.0
        %v2497 = vadd.f32 %v2495, %v2496
        %v2498 = vsel %vm1827, %v2295, 0.0
        %v2499 = vadd.f32 %v2497, %v2498
        %v2500 = vsel %vm1827, %v2296, 0.0
        %v2501 = vadd.f32 %v2499, %v2500
        %v2502 = vsel %vm1827, %v2297, 0.0
        %v2503 = vadd.f32 %v2501, %v2502
        %v2504 = vsel %vm1827, %v2298, 0.0
        %v2505 = vadd.f32 %v2503, %v2504
        %v2506 = vsel %vm1827, %v2299, 0.0
        %v2507 = vadd.f32 %v2505, %v2506
        %v2508 = vsel %vm1827, %v2300, 0.0
        %v2509 = vadd.f32 %v2507, %v2508
        %v2510 = vsel %vm1827, %v2301, 0.0
        %v2511 = vadd.f32 %v2509, %v2510
        %v2512 = vsel %vm1827, %v2302, 0.0
        %v2513 = vadd.f32 %v2511, %v2512
        %v2514 = vsel %vm1827, %v2303, 0.0
        %v2515 = vadd.f32 %v2513, %v2514
        %v2516 = vsel %vm1827, %v2304, 0.0
        %v2517 = vadd.f32 %v2515, %v2516
        %v2518 = vsel %vm1827, %v2305, 0.0
        %v2519 = vadd.f32 %v2517, %v2518
        %v2520 = vsel %vm1827, %v2306, 0.0
        %v2521 = vadd.f32 %v2519, %v2520
        %v2522 = vsel %vm1827, %v2307, 0.0
        %v2523 = vadd.f32 %v2521, %v2522
        %v2524 = vsel %vm1827, %v2308, 0.0
        %v2525 = vadd.f32 %v2523, %v2524
        %v2526 = vsel %vm1827, %v2309, 0.0
        %v2527 = vadd.f32 %v2525, %v2526
        %v2528 = vsel %vm1827, %v2310, 0.0
        %v2529 = vadd.f32 %v2527, %v2528
        %v2530 = vsel %vm1827, %v2311, 0.0
        %v2531 = vadd.f32 %v2529, %v2530
        %v2532 = vsel %vm1827, %v2312, 0.0
        %v2533 = vadd.f32 %v2531, %v2532
        %v2534 = vsel %vm1827, %v2313, 0.0
        %v2535 = vadd.f32 %v2533, %v2534
        %v2536 = vsel %vm1827, %v2314, 0.0
        %v2537 = vadd.f32 %v2535, %v2536
        %v2538 = vsel %vm1827, %v2315, 0.0
        %v2539 = vadd.f32 %v2537, %v2538
        %v2540 = vsel %vm1827, %v2316, 0.0
        %v2541 = vadd.f32 %v2539, %v2540
        %v2542 = vsel %vm1827, %v2317, 0.0
        %v2543 = vadd.f32 %v2541, %v2542
        %v2544 = vsel %vm1827, %v2318, 0.0
        %v2545 = vadd.f32 %v2543, %v2544
        %v2546 = vsel %vm1827, %v2319, 0.0
        %v2547 = vadd.f32 %v2545, %v2546
        %v2548 = vsel %vm1827, %v2320, 0.0
        %v2549 = vadd.f32 %v2547, %v2548
        %v2550 = vsel %vm1827, %v2321, 0.0
        %v2551 = vadd.f32 %v2549, %v2550
        %v2552 = vsel %vm1827, %v2322, 0.0
        %v2553 = vadd.f32 %v2551, %v2552
        %v2554 = vsel %vm1827, %v2323, 0.0
        %v2555 = vadd.f32 %v2553, %v2554
        %v2556 = vsel %vm1827, %v2324, 0.0
        %v2557 = vadd.f32 %v2555, %v2556
        %v2558 = vsel %vm1827, %v2325, 0.0
        %v2559 = vadd.f32 %v2557, %v2558
        %v2560 = vsel %vm1827, %v2326, 0.0
        %v2561 = vadd.f32 %v2559, %v2560
        %v2562 = vsel %vm1827, %v2327, 0.0
        %v2563 = vadd.f32 %v2561, %v2562
        %v2564 = vsel %vm1827, %v2328, 0.0
        %v2565 = vadd.f32 %v2563, %v2564
        %v2566 = vsel %vm1827, %v2329, 0.0
        %v2567 = vadd.f32 %v2565, %v2566
        %v2568 = vsel %vm1827, %v2330, 0.0
        %v2569 = vadd.f32 %v2567, %v2568
        %v2570 = vsel %vm1827, %v2331, 0.0
        %v2571 = vadd.f32 %v2569, %v2570
        %v2572 = vsel %vm1827, %v2332, 0.0
        %v2573 = vadd.f32 %v2571, %v2572
        %v2574 = vsel %vm1827, %v2333, 0.0
        %v2575 = vadd.f32 %v2573, %v2574
        %v2576 = vsel %vm1827, %v2334, 0.0
        %v2577 = vadd.f32 %v2575, %v2576
        %v2578 = vsel %vm1827, %v2335, 0.0
        %v2579 = vadd.f32 %v2577, %v2578
        %v2580 = vsel %vm1827, %v2336, 0.0
        %v2581 = vadd.f32 %v2579, %v2580
        %v2582 = vsel %vm1827, %v2337, 0.0
        %v2583 = vadd.f32 %v2581, %v2582
        %v2584 = vsel %vm1827, %v2338, 0.0
        %v2585 = vadd.f32 %v2583, %v2584
        %v2586 = vsel %vm1827, %v2339, 0.0
        %v2587 = vadd.f32 %v2585, %v2586
        %v2588 = vsel %vm1827, %v2340, 0.0
        %v2589 = vadd.f32 %v2587, %v2588
        %v2590 = vsel %vm1827, %v2341, 0.0
        %v2591 = vadd.f32 %v2589, %v2590
        %v2592 = vsel %vm1827, %v2342, 0.0
        %v2593 = vadd.f32 %v2591, %v2592
        %v2594 = vsel %vm1827, %v2343, 0.0
        %v2595 = vadd.f32 %v2593, %v2594
        %v2596 = vsel %vm1827, %v2344, 0.0
        %v2597 = vadd.f32 %v2595, %v2596
        %v2598 = vsel %vm1827, %v2345, 0.0
        %v2599 = vadd.f32 %v2597, %v2598
        %v2600 = vsel %vm1827, %v2346, 0.0
        %v2601 = vadd.f32 %v2599, %v2600
        %v2602 = vrot.slane %v2601, 4
        %v2603 = vadd.f32 %v2601, %v2602
        %v2604 = vrot.slane %v2603, 2
        %v2605 = vadd.f32 %v2603, %v2604
        %v2606 = vrot.slane %v2605, 1
        %v2607 = vadd.f32 %v2605, %v2606
        %2608 = vst.msk [vmem:[%s174 + $0x1] sm:$0x1] %vm2217, %v2607
        %s2609 = smul.u32 128, %s18
        %p2610 = scmp.lt.s32.totalorder %s2609, 511
        %s2611 = scalar_select %p2610, %s2609, 511
        %s2612 = smul.addr %s2611, 8
        %s2613 = scalar_lea.vmem %s2, %s2612
        %s2614 = sand.u32 %s99, 1
        %s2615 = scalar_lea.sflag [#allocation3], %s2614
        %s2616 = sand.u32 %s99, 1
        %s2617 = smul.addr %s2616, 2
        %s2618 = scalar_lea.vmem [#allocation2], %s2617
        // Predicated region
        $region29: #{tpu_custom_call.1} parent=27 // pred_check
          %p2619 = pneg %p83
        $region30: #{tpu_custom_call.1} parent=27 // pred_check_branch
          %2621 = sbr.rel (%p2619) target = $region32
        $region31: #{tpu_custom_call.1} parent=27 // pred_region
          %s2622 = smul.u32 128, %s18
        $region32: #{tpu_custom_call.1} parent=27 // pred_fallthru
          _
        // Predicated region
        $region33: #{tpu_custom_call.1} parent=27 // pred_check
          %p2623 = pneg %p109
        $region34: #{tpu_custom_call.1} parent=27 // pred_check_branch
          %2625 = sbr.rel (%p2623) target = $region36
        $region35: #{tpu_custom_call.1} parent=27 // pred_region
          %2627 = vsyncadd %s2615, 0
          %s2628 = smul.addr %s18, 2
          %s2629 = scalar_lea.hbm %s3, %s2628
          %s2631 = sshll.u32 %s2618, 4
          %s2632 = int_to_ptr.vmem [resolvable:$true] %s2631
          %s2633 = sshll.u32 %s2629, 4
          %s2634 = int_to_ptr.hbm [resolvable:$true] %s2633
          %2636 = dma.vmem_to_hbm [thread:$0]  %s2632, 32, %s2634, %s2615
        $region36: #{tpu_custom_call.1} parent=27 // pred_fallthru
          _
      $region28: #{tpu_custom_call.1} parent=5 // pred_fallthru
        _
      %p2637 = scmp.le.s32.totalorder 2, %s13
      // Predicated region
      $region37: #{tpu_custom_call.1} parent=5 // pred_check
        %p2638 = pneg %p2637
      $region38: #{tpu_custom_call.1} parent=5 // pred_check_branch
        %2640 = sbr.rel (%p2638) target = $region40
      $region39: #{tpu_custom_call.1} parent=5 // pred_region
        %s2641 = ssub.s32 %s13, 2
        // Predicated region
        $region41: #{tpu_custom_call.1} parent=39 // pred_check
          %p2642 = pneg %p89
        $region42: #{tpu_custom_call.1} parent=39 // pred_check_branch
          %2644 = sbr.rel (%p2642) target = $region44
        $region43: #{tpu_custom_call.1} parent=39 // pred_region
          %s2645 = smul.u32 128, %s19
          %p2646 = scmp.lt.s32.totalorder %s2645, 511
          %s2647 = scalar_select %p2646, %s2645, 511
          %s2648 = smul.addr %s2647, 8
          %s2649 = scalar_lea.vmem %s2, %s2648
        $region44: #{tpu_custom_call.1} parent=39 // pred_fallthru
          _
        // Predicated region
        $region45: #{tpu_custom_call.1} parent=39 // pred_check
          %p2650 = pneg %p115
        $region46: #{tpu_custom_call.1} parent=39 // pred_check_branch
          %2652 = sbr.rel (%p2650) target = $region48
        $region47: #{tpu_custom_call.1} parent=39 // pred_region
          %s2653 = sand.u32 %s100, 1
          %s2654 = scalar_lea.sflag [#allocation3], %s2653
          %s2655 = sand.u32 %s100, 1
          %s2656 = smul.addr %s2655, 2
          %s2657 = scalar_lea.vmem [#allocation2], %s2656
          %2659 = dma.done %s2654, 32
        $region48: #{tpu_custom_call.1} parent=39 // pred_fallthru
          _
      $region40: #{tpu_custom_call.1} parent=5 // pred_fallthru
        _
    $region6: #{tpu_custom_call.1} parent=1 // loop_footer
      %s17 = sadd.s32 1, %s13
    $region7: #{tpu_custom_call.1} parent=1 // loop_footer_branch
      %12 = sbr.rel target = $region3
    $region8: #{tpu_custom_call.1} parent=1 // loop_exit
      _
    %2660 = vsyncpa [#allocation3], 1
    %s2661 = scalar_lea.sflag [#allocation3], 1
    %2662 = vsyncpa %s2661, 1

</llo_original>
